<compile_context>
chip_gen: v6e
topology: v6e:2x2x1
jax: 0.10.0
libtpu: 0.0.40
codegen_flags: <defaults>
</compile_context>

<pallas_src>
import jax
import jax.numpy as jnp
from jax.experimental import pallas as pl
from jax.experimental.pallas import tpu as pltpu


def fc_kernel(x_ref, w_ref, b_ref, o_ref):
    # x: (B, K) f32  -> cast to bf16 in-kernel (free VPU filler; no wrapper convert op)
    # w: (K, N) bf16 (pre-transposed / pre-cast once in __init__)
    # b: (1, N) f32
    # o: (B, N) f32
    x_bf16 = x_ref[...].astype(jnp.bfloat16)
    acc = jnp.dot(x_bf16, w_ref[...], preferred_element_type=jnp.float32)
    o_ref[...] = acc + b_ref[...]


@jax.jit
def fc_pallas(x_flat, w_t_bf16, b_row):
    """y = x_flat @ W.T + b (nn.Linear semantics), single-step Pallas call.

    x_flat:   (B, K) f32
    w_t_bf16: (K, N) bf16 pre-transposed weight
    b_row:    (1, N) f32 bias
    """
    B, K = x_flat.shape
    N = w_t_bf16.shape[1]

    cost = pl.CostEstimate(
        flops=2 * B * K * N,
        transcendentals=0,
        bytes_accessed=K * N * 2 + B * K * 4 + B * N * 4 + N * 4,
    )

    return pl.pallas_call(
        fc_kernel,
        out_shape=jax.ShapeDtypeStruct((B, N), jnp.float32),
        grid=(1,),
        in_specs=[
            pl.BlockSpec((B, K), lambda i: (0, 0)),   # activations (whole array)
            pl.BlockSpec((K, N), lambda i: (0, 0)),   # bf16 weight (whole array)
            pl.BlockSpec((1, N), lambda i: (0, 0)),   # bias row
        ],
        out_specs=pl.BlockSpec((B, N), lambda i: (0, 0)),
        compiler_params=pltpu.CompilerParams(
            dimension_semantics=("arbitrary",)),
        cost_estimate=cost,
    )(x_flat, w_t_bf16, b_row)


class ResNetImageNetPallas:
    """Observable forward of ResNet_ImageNet: fc(torch.flatten(x, 1))."""

    def __init__(self, num_classes=1000, expansion=1, key=jax.random.PRNGKey(0)):
        in_features = 512 * expansion            # 512 * block.expansion
        kw, kb = jax.random.split(key)
        bound = 1.0 / (in_features ** 0.5)       # PyTorch nn.Linear default init range
        self.fc_weight = jax.random.uniform(
            kw, (num_classes, in_features), jnp.float32, -bound, bound)
        self.fc_bias = jax.random.uniform(
            kb, (num_classes,), jnp.float32, -bound, bound)
        self.in_features = in_features
        self.num_classes = num_classes

        # Precompute transposed / bf16-cast weight and 2-D bias once (not per call).
        self.w_t_bf16 = self.fc_weight.T.astype(jnp.bfloat16)        # (K, N)
        self.b_row = self.fc_bias.reshape(1, num_classes)            # (1, N)

    def __call__(self, x):
        # x: NCHW; torch.flatten(x, 1)
        B = x.shape[0]
        x_flat = x.reshape(B, -1)
        assert x_flat.shape[1] == self.in_features, (
            "flatten(x,1) must match fc in_features (512*expansion), as in the reference")
        return fc_pallas(x_flat, self.w_t_bf16, self.b_row)


if __name__ == "__main__":
    key = jax.random.PRNGKey(0)
    kx, kp = jax.random.split(key)

    # C*H*W must equal 512*expansion so the reference `self.fc(torch.flatten(x, 1))`
    # is shape-consistent (BasicBlock expansion=1).
    B, C, H, W = 2, 2, 16, 16          # 2*16*16 = 512
    x = jax.random.normal(kx, (B, C, H, W), jnp.float32)

    model = ResNetImageNetPallas(num_classes=1000, expansion=1, key=kp)
    y = jax.block_until_ready(model(x))
    assert y.shape == (B, 1000), y.shape

    # Tight reference for the exact computation the kernel does (bf16 inputs,
    # f32 accumulation).
    x_flat = x.reshape(B, -1)
    x_b = x_flat.astype(jnp.bfloat16).astype(jnp.float32)
    w_b = model.fc_weight.astype(jnp.bfloat16).astype(jnp.float32)
    y_ref_bf16 = x_b @ w_b.T + model.fc_bias
    assert jnp.allclose(y, y_ref_bf16, atol=1e-4, rtol=1e-4), "mismatch vs bf16 reference"

    # Looser sanity check against the full-precision nn.Linear reference.
    y_ref_f32 = x_flat @ model.fc_weight.T + model.fc_bias
    assert jnp.allclose(y, y_ref_f32, atol=2e-2, rtol=2e-2), "mismatch vs f32 reference"

    print("KERNEL_OK")
</pallas_src>

<mosaic_0001>
module attributes {stable_mosaic.version = 11 : i64} {
  func.func @fc_kernel(%arg0: i32, %arg1: memref<2x512xf32, #tpu.memory_space<vmem>>, %arg2: memref<512x1000xbf16, #tpu.memory_space<vmem>>, %arg3: memref<1x1000xf32, #tpu.memory_space<vmem>>, %arg4: memref<2x1000xf32, #tpu.memory_space<vmem>>) attributes {dimension_semantics = [#tpu.dimension_semantics<arbitrary>], iteration_bounds = array<i64: 1>, scalar_prefetch = 0 : i64, scratch_operands = 0 : i64, tpu.core_type = #tpu.core_type<tc>, window_params = [{pipeline_mode = #tpu.pipeline_mode<synchronous>, transform_indices = @transform_0, window_bounds = array<i64: 2, 512>}, {pipeline_mode = #tpu.pipeline_mode<synchronous>, transform_indices = @transform_1, window_bounds = array<i64: 512, 1000>}, {pipeline_mode = #tpu.pipeline_mode<synchronous>, transform_indices = @transform_2, window_bounds = array<i64: 1, 1000>}, {pipeline_mode = #tpu.pipeline_mode<synchronous>, transform_indices = @transform_3, window_bounds = array<i64: 2, 1000>}]} {
    %c0 = arith.constant 0 : index
    %c0_0 = arith.constant 0 : index
    %0 = vector.load %arg1[%c0, %c0_0] : memref<2x512xf32, #tpu.memory_space<vmem>>, vector<2x512xf32>
    %1 = arith.truncf %0 : vector<2x512xf32> to vector<2x512xbf16>
    %c0_1 = arith.constant 0 : index
    %c0_2 = arith.constant 0 : index
    %2 = vector.load %arg2[%c0_1, %c0_2] : memref<512x1000xbf16, #tpu.memory_space<vmem>>, vector<512x1000xbf16>
    %cst = arith.constant dense<0.000000e+00> : vector<2x1000xf32>
    %3 = tpu.matmul %1, %2, %cst {dimension_numbers = #tpu.dot_dimension_numbers<[1], [0], [0], [1], [0, 0, 1, 1], [], []>} : vector<2x512xbf16>, vector<512x1000xbf16>, vector<2x1000xf32> -> vector<2x1000xf32>
    %c0_3 = arith.constant 0 : index
    %c0_4 = arith.constant 0 : index
    %4 = vector.load %arg3[%c0_3, %c0_4] : memref<1x1000xf32, #tpu.memory_space<vmem>>, vector<1x1000xf32>
    %5 = vector.broadcast %4 : vector<1x1000xf32> to vector<2x1000xf32>
    %6 = arith.addf %3, %5 : vector<2x1000xf32>
    %c0_5 = arith.constant 0 : index
    %c0_6 = arith.constant 0 : index
    %7 = vector.load %arg4[%c0_5, %c0_6] : memref<2x1000xf32, #tpu.memory_space<vmem>>, vector<2x1000xf32>
    tpu.vector_store %arg4[%c0_5, %c0_6], %6 {strides = array<i32>} : memref<2x1000xf32, #tpu.memory_space<vmem>>, vector<2x1000xf32>,
    return
  }
  func.func @transform_0(%arg0: i32) -> (i32, i32) {
    %c0_i32 = arith.constant 0 : i32
    %c0_i32_0 = arith.constant 0 : i32
    %c0_i32_1 = arith.constant 0 : i32
    return %c0_i32, %c0_i32_0 : i32, i32
  }
  func.func @transform_1(%arg0: i32) -> (i32, i32) {
    %c0_i32 = arith.constant 0 : i32
    %c0_i32_0 = arith.constant 0 : i32
    %c0_i32_1 = arith.constant 0 : i32
    return %c0_i32, %c0_i32_0 : i32, i32
  }
  func.func @transform_2(%arg0: i32) -> (i32, i32) {
    %c0_i32 = arith.constant 0 : i32
    %c0_i32_0 = arith.constant 0 : i32
    %c0_i32_1 = arith.constant 0 : i32
    return %c0_i32, %c0_i32_0 : i32, i32
  }
  func.func @transform_3(%arg0: i32) -> (i32, i32) {
    %c0_i32 = arith.constant 0 : i32
    %c0_i32_0 = arith.constant 0 : i32
    %c0_i32_1 = arith.constant 0 : i32
    return %c0_i32, %c0_i32_0 : i32, i32
  }
}

</mosaic_0001>

<llo_original>
// kernel: fc_pallas.1
$region0: #{fc_pallas.1}
  #allocation0 [shape = 'u32[]', space=smem, size = 0x4, offset = 0x4, fixed_abs, tag = 'smem constant byte address 0x4 - core index']
  #allocation1 [shape = 'u32[144,128]{1,0:T(1,128)}', space=vmem, size = 0x12000, scoped, tag = 'internal scratch']
  %s0 = inlined_call_operand.vmem [shape: f32[2,512], index: 0, kind: input, shape index: {}]
  %s1 = inlined_call_operand.vmem [shape: bf16[512,1000], index: 1, kind: input, shape index: {}]
  %s2 = inlined_call_operand.vmem [shape: f32[1,1000], index: 2, kind: input, shape index: {}]
  %s3 = inlined_call_operand.hbm [shape: f32[2,1000], index: 3, kind: output, shape index: {}]
  %s4 = sld [smem:[#allocation0]]
  $region22: #{fc_pallas.1} parent=0
    _
  %s6 = ssub.s32 1, %s4
  %s7 = scalar_select 0, %s6, %s4
  $region1: #{fc_pallas.1} parent=0
    #allocation2 [shape = 'u8[8192]{0}', space=vmem, size = 0x2000, scoped, tag = 'output window, operand 0, single buffered']
    #allocation3 [shape = 's32[1]{0}', space=sflag, size = 0x4, scoped, tag = 'scoped memory for fc_pallas.1']
    %8 = vsyncpa [#allocation3], 0
    // Predicated region
    $region2: #{fc_pallas.1} parent=1 // pred_check
      _
    $region3: #{fc_pallas.1} parent=1 // pred_check_branch
      %10 = sbr.rel (0) target = $region5
    $region4: #{fc_pallas.1} parent=1 // pred_region
      _
    $region5: #{fc_pallas.1} parent=1 // pred_fallthru
      _
    // Predicated region
    $region6: #{fc_pallas.1} parent=1 // pred_check
      _
    $region7: #{fc_pallas.1} parent=1 // pred_check_branch
      %12 = sbr.rel (0) target = $region9
    $region8: #{fc_pallas.1} parent=1 // pred_region
      _
    $region9: #{fc_pallas.1} parent=1 // pred_fallthru
      _
    // Predicated region
    $region10: #{fc_pallas.1} parent=1 // pred_check
      _
    $region11: #{fc_pallas.1} parent=1 // pred_check_branch
      %14 = sbr.rel (0) target = $region13
    $region12: #{fc_pallas.1} parent=1 // pred_region
      _
    $region13: #{fc_pallas.1} parent=1 // pred_fallthru
      _
    %v15 = vld [vmem:[%s0] sm:$0xff]
    %v17 = vcombine.high %v15, %v15
    %v19 = vunpack.c.l.s4 1983009808
    %v20 = vunpack.c.0.s8 %v19
    %v21 = vlaneseq
    %v22 = vshrl.u32 %v21, 7
    %v23 = vsub.s32 %v20, %v22
    %v24 = vrot.slane %v15, %v23
    %v26 = vunpack.c.l.s4 1983009808
    %v27 = vunpack.c.0.s8 %v26
    %v28 = vlaneseq
    %v29 = vshrl.u32 %v28, 7
    %v30 = vsub.s32 %v27, %v29
    %v31 = vrot.slane %v17, %v30
    %v32 = vcombine.high %v24, %v24
    %v33 = vcombine.high %v31, %v31
    %v38 = vpack.c.bf16 %v24, %v24
    %v39 = vpack.c.bf16 %v32, %v32
    %v40 = vpack.c.bf16 %v31, %v31
    %v41 = vpack.c.bf16 %v33, %v33
    %v42 = vld [vmem:[%s1] sm:$0xff]
    %v43 = vld [vmem:[%s1 + $0x8] sm:$0xff]
    %v44 = vld [vmem:[%s1 + $0x10] sm:$0xff]
    %v45 = vld [vmem:[%s1 + $0x18] sm:$0xff]
    %v46 = vld [vmem:[%s1 + $0x20] sm:$0xff]
    %v47 = vld [vmem:[%s1 + $0x28] sm:$0xff]
    %v48 = vld [vmem:[%s1 + $0x30] sm:$0xff]
    %v49 = vld [vmem:[%s1 + $0x38] sm:$0xff]
    %v50 = vld [vmem:[%s1 + $0x40] sm:$0xff]
    %v51 = vld [vmem:[%s1 + $0x48] sm:$0xff]
    %v52 = vld [vmem:[%s1 + $0x50] sm:$0xff]
    %v53 = vld [vmem:[%s1 + $0x58] sm:$0xff]
    %v54 = vld [vmem:[%s1 + $0x60] sm:$0xff]
    %v55 = vld [vmem:[%s1 + $0x68] sm:$0xff]
    %v56 = vld [vmem:[%s1 + $0x70] sm:$0xff]
    %v57 = vld [vmem:[%s1 + $0x78] sm:$0xff]
    %v58 = vld [vmem:[%s1 + $0x80] sm:$0xff]
    %v59 = vld [vmem:[%s1 + $0x88] sm:$0xff]
    %v60 = vld [vmem:[%s1 + $0x90] sm:$0xff]
    %v61 = vld [vmem:[%s1 + $0x98] sm:$0xff]
    %v62 = vld [vmem:[%s1 + $0xa0] sm:$0xff]
    %v63 = vld [vmem:[%s1 + $0xa8] sm:$0xff]
    %v64 = vld [vmem:[%s1 + $0xb0] sm:$0xff]
    %v65 = vld [vmem:[%s1 + $0xb8] sm:$0xff]
    %v66 = vld [vmem:[%s1 + $0xc0] sm:$0xff]
    %v67 = vld [vmem:[%s1 + $0xc8] sm:$0xff]
    %v68 = vld [vmem:[%s1 + $0xd0] sm:$0xff]
    %v69 = vld [vmem:[%s1 + $0xd8] sm:$0xff]
    %v70 = vld [vmem:[%s1 + $0xe0] sm:$0xff]
    %v71 = vld [vmem:[%s1 + $0xe8] sm:$0xff]
    %v72 = vld [vmem:[%s1 + $0xf0] sm:$0xff]
    %v73 = vld [vmem:[%s1 + $0xf8] sm:$0xff]
    %v74 = vld [vmem:[%s1 + $0x100] sm:$0xff]
    %v75 = vld [vmem:[%s1 + $0x108] sm:$0xff]
    %v76 = vld [vmem:[%s1 + $0x110] sm:$0xff]
    %v77 = vld [vmem:[%s1 + $0x118] sm:$0xff]
    %v78 = vld [vmem:[%s1 + $0x120] sm:$0xff]
    %v79 = vld [vmem:[%s1 + $0x128] sm:$0xff]
    %v80 = vld [vmem:[%s1 + $0x130] sm:$0xff]
    %v81 = vld [vmem:[%s1 + $0x138] sm:$0xff]
    %v82 = vld [vmem:[%s1 + $0x140] sm:$0xff]
    %v83 = vld [vmem:[%s1 + $0x148] sm:$0xff]
    %v84 = vld [vmem:[%s1 + $0x150] sm:$0xff]
    %v85 = vld [vmem:[%s1 + $0x158] sm:$0xff]
    %v86 = vld [vmem:[%s1 + $0x160] sm:$0xff]
    %v87 = vld [vmem:[%s1 + $0x168] sm:$0xff]
    %v88 = vld [vmem:[%s1 + $0x170] sm:$0xff]
    %v89 = vld [vmem:[%s1 + $0x178] sm:$0xff]
    %v90 = vld [vmem:[%s1 + $0x180] sm:$0xff]
    %v91 = vld [vmem:[%s1 + $0x188] sm:$0xff]
    %v92 = vld [vmem:[%s1 + $0x190] sm:$0xff]
    %v93 = vld [vmem:[%s1 + $0x198] sm:$0xff]
    %v94 = vld [vmem:[%s1 + $0x1a0] sm:$0xff]
    %v95 = vld [vmem:[%s1 + $0x1a8] sm:$0xff]
    %v96 = vld [vmem:[%s1 + $0x1b0] sm:$0xff]
    %v97 = vld [vmem:[%s1 + $0x1b8] sm:$0xff]
    %v98 = vld [vmem:[%s1 + $0x1c0] sm:$0xff]
    %v99 = vld [vmem:[%s1 + $0x1c8] sm:$0xff]
    %v100 = vld [vmem:[%s1 + $0x1d0] sm:$0xff]
    %v101 = vld [vmem:[%s1 + $0x1d8] sm:$0xff]
    %v102 = vld [vmem:[%s1 + $0x1e0] sm:$0xff]
    %v103 = vld [vmem:[%s1 + $0x1e8] sm:$0xff]
    %v104 = vld [vmem:[%s1 + $0x1f0] sm:$0xff]
    %v105 = vld [vmem:[%s1 + $0x1f8] sm:$0xff]
    %v106 = vld [vmem:[%s1 + $0x200] sm:$0xff]
    %v107 = vld [vmem:[%s1 + $0x208] sm:$0xff]
    %v108 = vld [vmem:[%s1 + $0x210] sm:$0xff]
    %v109 = vld [vmem:[%s1 + $0x218] sm:$0xff]
    %v110 = vld [vmem:[%s1 + $0x220] sm:$0xff]
    %v111 = vld [vmem:[%s1 + $0x228] sm:$0xff]
    %v112 = vld [vmem:[%s1 + $0x230] sm:$0xff]
    %v113 = vld [vmem:[%s1 + $0x238] sm:$0xff]
    %v114 = vld [vmem:[%s1 + $0x240] sm:$0xff]
    %v115 = vld [vmem:[%s1 + $0x248] sm:$0xff]
    %v116 = vld [vmem:[%s1 + $0x250] sm:$0xff]
    %v117 = vld [vmem:[%s1 + $0x258] sm:$0xff]
    %v118 = vld [vmem:[%s1 + $0x260] sm:$0xff]
    %v119 = vld [vmem:[%s1 + $0x268] sm:$0xff]
    %v120 = vld [vmem:[%s1 + $0x270] sm:$0xff]
    %v121 = vld [vmem:[%s1 + $0x278] sm:$0xff]
    %v122 = vld [vmem:[%s1 + $0x280] sm:$0xff]
    %v123 = vld [vmem:[%s1 + $0x288] sm:$0xff]
    %v124 = vld [vmem:[%s1 + $0x290] sm:$0xff]
    %v125 = vld [vmem:[%s1 + $0x298] sm:$0xff]
    %v126 = vld [vmem:[%s1 + $0x2a0] sm:$0xff]
    %v127 = vld [vmem:[%s1 + $0x2a8] sm:$0xff]
    %v128 = vld [vmem:[%s1 + $0x2b0] sm:$0xff]
    %v129 = vld [vmem:[%s1 + $0x2b8] sm:$0xff]
    %v130 = vld [vmem:[%s1 + $0x2c0] sm:$0xff]
    %v131 = vld [vmem:[%s1 + $0x2c8] sm:$0xff]
    %v132 = vld [vmem:[%s1 + $0x2d0] sm:$0xff]
    %v133 = vld [vmem:[%s1 + $0x2d8] sm:$0xff]
    %v134 = vld [vmem:[%s1 + $0x2e0] sm:$0xff]
    %v135 = vld [vmem:[%s1 + $0x2e8] sm:$0xff]
    %v136 = vld [vmem:[%s1 + $0x2f0] sm:$0xff]
    %v137 = vld [vmem:[%s1 + $0x2f8] sm:$0xff]
    %v138 = vld [vmem:[%s1 + $0x300] sm:$0xff]
    %v139 = vld [vmem:[%s1 + $0x308] sm:$0xff]
    %v140 = vld [vmem:[%s1 + $0x310] sm:$0xff]
    %v141 = vld [vmem:[%s1 + $0x318] sm:$0xff]
    %v142 = vld [vmem:[%s1 + $0x320] sm:$0xff]
    %v143 = vld [vmem:[%s1 + $0x328] sm:$0xff]
    %v144 = vld [vmem:[%s1 + $0x330] sm:$0xff]
    %v145 = vld [vmem:[%s1 + $0x338] sm:$0xff]
    %v146 = vld [vmem:[%s1 + $0x340] sm:$0xff]
    %v147 = vld [vmem:[%s1 + $0x348] sm:$0xff]
    %v148 = vld [vmem:[%s1 + $0x350] sm:$0xff]
    %v149 = vld [vmem:[%s1 + $0x358] sm:$0xff]
    %v150 = vld [vmem:[%s1 + $0x360] sm:$0xff]
    %v151 = vld [vmem:[%s1 + $0x368] sm:$0xff]
    %v152 = vld [vmem:[%s1 + $0x370] sm:$0xff]
    %v153 = vld [vmem:[%s1 + $0x378] sm:$0xff]
    %v154 = vld [vmem:[%s1 + $0x380] sm:$0xff]
    %v155 = vld [vmem:[%s1 + $0x388] sm:$0xff]
    %v156 = vld [vmem:[%s1 + $0x390] sm:$0xff]
    %v157 = vld [vmem:[%s1 + $0x398] sm:$0xff]
    %v158 = vld [vmem:[%s1 + $0x3a0] sm:$0xff]
    %v159 = vld [vmem:[%s1 + $0x3a8] sm:$0xff]
    %v160 = vld [vmem:[%s1 + $0x3b0] sm:$0xff]
    %v161 = vld [vmem:[%s1 + $0x3b8] sm:$0xff]
    %v162 = vld [vmem:[%s1 + $0x3c0] sm:$0xff]
    %v163 = vld [vmem:[%s1 + $0x3c8] sm:$0xff]
    %v164 = vld [vmem:[%s1 + $0x3d0] sm:$0xff]
    %v165 = vld [vmem:[%s1 + $0x3d8] sm:$0xff]
    %v166 = vld [vmem:[%s1 + $0x3e0] sm:$0xff]
    %v167 = vld [vmem:[%s1 + $0x3e8] sm:$0xff]
    %v168 = vld [vmem:[%s1 + $0x3f0] sm:$0xff]
    %v169 = vld [vmem:[%s1 + $0x3f8] sm:$0xff]
    %v170 = vld [vmem:[%s1 + $0x400] sm:$0xff]
    %v171 = vld [vmem:[%s1 + $0x408] sm:$0xff]
    %v172 = vld [vmem:[%s1 + $0x410] sm:$0xff]
    %v173 = vld [vmem:[%s1 + $0x418] sm:$0xff]
    %v174 = vld [vmem:[%s1 + $0x420] sm:$0xff]
    %v175 = vld [vmem:[%s1 + $0x428] sm:$0xff]
    %v176 = vld [vmem:[%s1 + $0x430] sm:$0xff]
    %v177 = vld [vmem:[%s1 + $0x438] sm:$0xff]
    %v178 = vld [vmem:[%s1 + $0x440] sm:$0xff]
    %v179 = vld [vmem:[%s1 + $0x448] sm:$0xff]
    %v180 = vld [vmem:[%s1 + $0x450] sm:$0xff]
    %v181 = vld [vmem:[%s1 + $0x458] sm:$0xff]
    %v182 = vld [vmem:[%s1 + $0x460] sm:$0xff]
    %v183 = vld [vmem:[%s1 + $0x468] sm:$0xff]
    %v184 = vld [vmem:[%s1 + $0x470] sm:$0xff]
    %v185 = vld [vmem:[%s1 + $0x478] sm:$0xff]
    %v186 = vld [vmem:[%s1 + $0x480] sm:$0xff]
    %v187 = vld [vmem:[%s1 + $0x488] sm:$0xff]
    %v188 = vld [vmem:[%s1 + $0x490] sm:$0xff]
    %v189 = vld [vmem:[%s1 + $0x498] sm:$0xff]
    %v190 = vld [vmem:[%s1 + $0x4a0] sm:$0xff]
    %v191 = vld [vmem:[%s1 + $0x4a8] sm:$0xff]
    %v192 = vld [vmem:[%s1 + $0x4b0] sm:$0xff]
    %v193 = vld [vmem:[%s1 + $0x4b8] sm:$0xff]
    %v194 = vld [vmem:[%s1 + $0x4c0] sm:$0xff]
    %v195 = vld [vmem:[%s1 + $0x4c8] sm:$0xff]
    %v196 = vld [vmem:[%s1 + $0x4d0] sm:$0xff]
    %v197 = vld [vmem:[%s1 + $0x4d8] sm:$0xff]
    %v198 = vld [vmem:[%s1 + $0x4e0] sm:$0xff]
    %v199 = vld [vmem:[%s1 + $0x4e8] sm:$0xff]
    %v200 = vld [vmem:[%s1 + $0x4f0] sm:$0xff]
    %v201 = vld [vmem:[%s1 + $0x4f8] sm:$0xff]
    %v202 = vld [vmem:[%s1 + $0x500] sm:$0xff]
    %v203 = vld [vmem:[%s1 + $0x508] sm:$0xff]
    %v204 = vld [vmem:[%s1 + $0x510] sm:$0xff]
    %v205 = vld [vmem:[%s1 + $0x518] sm:$0xff]
    %v206 = vld [vmem:[%s1 + $0x520] sm:$0xff]
    %v207 = vld [vmem:[%s1 + $0x528] sm:$0xff]
    %v208 = vld [vmem:[%s1 + $0x530] sm:$0xff]
    %v209 = vld [vmem:[%s1 + $0x538] sm:$0xff]
    %v210 = vld [vmem:[%s1 + $0x540] sm:$0xff]
    %v211 = vld [vmem:[%s1 + $0x548] sm:$0xff]
    %v212 = vld [vmem:[%s1 + $0x550] sm:$0xff]
    %v213 = vld [vmem:[%s1 + $0x558] sm:$0xff]
    %v214 = vld [vmem:[%s1 + $0x560] sm:$0xff]
    %v215 = vld [vmem:[%s1 + $0x568] sm:$0xff]
    %v216 = vld [vmem:[%s1 + $0x570] sm:$0xff]
    %v217 = vld [vmem:[%s1 + $0x578] sm:$0xff]
    %v218 = vld [vmem:[%s1 + $0x580] sm:$0xff]
    %v219 = vld [vmem:[%s1 + $0x588] sm:$0xff]
    %v220 = vld [vmem:[%s1 + $0x590] sm:$0xff]
    %v221 = vld [vmem:[%s1 + $0x598] sm:$0xff]
    %v222 = vld [vmem:[%s1 + $0x5a0] sm:$0xff]
    %v223 = vld [vmem:[%s1 + $0x5a8] sm:$0xff]
    %v224 = vld [vmem:[%s1 + $0x5b0] sm:$0xff]
    %v225 = vld [vmem:[%s1 + $0x5b8] sm:$0xff]
    %v226 = vld [vmem:[%s1 + $0x5c0] sm:$0xff]
    %v227 = vld [vmem:[%s1 + $0x5c8] sm:$0xff]
    %v228 = vld [vmem:[%s1 + $0x5d0] sm:$0xff]
    %v229 = vld [vmem:[%s1 + $0x5d8] sm:$0xff]
    %v230 = vld [vmem:[%s1 + $0x5e0] sm:$0xff]
    %v231 = vld [vmem:[%s1 + $0x5e8] sm:$0xff]
    %v232 = vld [vmem:[%s1 + $0x5f0] sm:$0xff]
    %v233 = vld [vmem:[%s1 + $0x5f8] sm:$0xff]
    %v234 = vld [vmem:[%s1 + $0x600] sm:$0xff]
    %v235 = vld [vmem:[%s1 + $0x608] sm:$0xff]
    %v236 = vld [vmem:[%s1 + $0x610] sm:$0xff]
    %v237 = vld [vmem:[%s1 + $0x618] sm:$0xff]
    %v238 = vld [vmem:[%s1 + $0x620] sm:$0xff]
    %v239 = vld [vmem:[%s1 + $0x628] sm:$0xff]
    %v240 = vld [vmem:[%s1 + $0x630] sm:$0xff]
    %v241 = vld [vmem:[%s1 + $0x638] sm:$0xff]
    %v242 = vld [vmem:[%s1 + $0x640] sm:$0xff]
    %v243 = vld [vmem:[%s1 + $0x648] sm:$0xff]
    %v244 = vld [vmem:[%s1 + $0x650] sm:$0xff]
    %v245 = vld [vmem:[%s1 + $0x658] sm:$0xff]
    %v246 = vld [vmem:[%s1 + $0x660] sm:$0xff]
    %v247 = vld [vmem:[%s1 + $0x668] sm:$0xff]
    %v248 = vld [vmem:[%s1 + $0x670] sm:$0xff]
    %v249 = vld [vmem:[%s1 + $0x678] sm:$0xff]
    %v250 = vld [vmem:[%s1 + $0x680] sm:$0xff]
    %v251 = vld [vmem:[%s1 + $0x688] sm:$0xff]
    %v252 = vld [vmem:[%s1 + $0x690] sm:$0xff]
    %v253 = vld [vmem:[%s1 + $0x698] sm:$0xff]
    %v254 = vld [vmem:[%s1 + $0x6a0] sm:$0xff]
    %v255 = vld [vmem:[%s1 + $0x6a8] sm:$0xff]
    %v256 = vld [vmem:[%s1 + $0x6b0] sm:$0xff]
    %v257 = vld [vmem:[%s1 + $0x6b8] sm:$0xff]
    %v258 = vld [vmem:[%s1 + $0x6c0] sm:$0xff]
    %v259 = vld [vmem:[%s1 + $0x6c8] sm:$0xff]
    %v260 = vld [vmem:[%s1 + $0x6d0] sm:$0xff]
    %v261 = vld [vmem:[%s1 + $0x6d8] sm:$0xff]
    %v262 = vld [vmem:[%s1 + $0x6e0] sm:$0xff]
    %v263 = vld [vmem:[%s1 + $0x6e8] sm:$0xff]
    %v264 = vld [vmem:[%s1 + $0x6f0] sm:$0xff]
    %v265 = vld [vmem:[%s1 + $0x6f8] sm:$0xff]
    %v266 = vld [vmem:[%s1 + $0x700] sm:$0xff]
    %v267 = vld [vmem:[%s1 + $0x708] sm:$0xff]
    %v268 = vld [vmem:[%s1 + $0x710] sm:$0xff]
    %v269 = vld [vmem:[%s1 + $0x718] sm:$0xff]
    %v270 = vld [vmem:[%s1 + $0x720] sm:$0xff]
    %v271 = vld [vmem:[%s1 + $0x728] sm:$0xff]
    %v272 = vld [vmem:[%s1 + $0x730] sm:$0xff]
    %v273 = vld [vmem:[%s1 + $0x738] sm:$0xff]
    %v274 = vld [vmem:[%s1 + $0x740] sm:$0xff]
    %v275 = vld [vmem:[%s1 + $0x748] sm:$0xff]
    %v276 = vld [vmem:[%s1 + $0x750] sm:$0xff]
    %v277 = vld [vmem:[%s1 + $0x758] sm:$0xff]
    %v278 = vld [vmem:[%s1 + $0x760] sm:$0xff]
    %v279 = vld [vmem:[%s1 + $0x768] sm:$0xff]
    %v280 = vld [vmem:[%s1 + $0x770] sm:$0xff]
    %v281 = vld [vmem:[%s1 + $0x778] sm:$0xff]
    %v282 = vld [vmem:[%s1 + $0x780] sm:$0xff]
    %v283 = vld [vmem:[%s1 + $0x788] sm:$0xff]
    %v284 = vld [vmem:[%s1 + $0x790] sm:$0xff]
    %v285 = vld [vmem:[%s1 + $0x798] sm:$0xff]
    %v286 = vld [vmem:[%s1 + $0x7a0] sm:$0xff]
    %v287 = vld [vmem:[%s1 + $0x7a8] sm:$0xff]
    %v288 = vld [vmem:[%s1 + $0x7b0] sm:$0xff]
    %v289 = vld [vmem:[%s1 + $0x7b8] sm:$0xff]
    %v290 = vld [vmem:[%s1 + $0x7c0] sm:$0xff]
    %v291 = vld [vmem:[%s1 + $0x7c8] sm:$0xff]
    %v292 = vld [vmem:[%s1 + $0x7d0] sm:$0xff]
    %v293 = vld [vmem:[%s1 + $0x7d8] sm:$0xff]
    %v294 = vld [vmem:[%s1 + $0x7e0] sm:$0xff]
    %v295 = vld [vmem:[%s1 + $0x7e8] sm:$0xff]
    %v296 = vld [vmem:[%s1 + $0x7f0] sm:$0xff]
    %v297 = vld [vmem:[%s1 + $0x7f8] sm:$0xff]
    %v298 = vld [vmem:[%s2] sm:$0xff]
    %v300 = vlaneseq
    %v301 = vshrl.u32 %v300, 7
    %v302 = vsub.s32 0, %v301
    %v303 = vrot.slane %v298, %v302
    %v304 = vlaneseq
    %v305 = vshrl.u32 %v304, 7
    %v306 = vsub.s32 1, %v305
    %v307 = vrot.slane %v298, %v306
    %v308 = vlaneseq
    %v309 = vshrl.u32 %v308, 7
    %v310 = vsub.s32 2, %v309
    %v311 = vrot.slane %v298, %v310
    %v312 = vlaneseq
    %v313 = vshrl.u32 %v312, 7
    %v314 = vsub.s32 3, %v313
    %v315 = vrot.slane %v298, %v314
    %v316 = vlaneseq
    %v317 = vshrl.u32 %v316, 7
    %v318 = vsub.s32 4, %v317
    %v319 = vrot.slane %v298, %v318
    %v320 = vlaneseq
    %v321 = vshrl.u32 %v320, 7
    %v322 = vsub.s32 5, %v321
    %v323 = vrot.slane %v298, %v322
    %v324 = vlaneseq
    %v325 = vshrl.u32 %v324, 7
    %v326 = vsub.s32 6, %v325
    %v327 = vrot.slane %v298, %v326
    %v328 = vlaneseq
    %v329 = vshrl.u32 %v328, 7
    %v330 = vsub.s32 7, %v329
    %v331 = vrot.slane %v298, %v330
    %v596 = vunpack.c.l.b16 %v42
    %v597 = vunpack.c.h.b16 %v42
    %v598 = vunpack.c.l.b16 %v43
    %v599 = vunpack.c.h.b16 %v43
    %v600 = vunpack.c.l.b16 %v44
    %v601 = vunpack.c.h.b16 %v44
    %v602 = vunpack.c.l.b16 %v45
    %v603 = vunpack.c.h.b16 %v45
    %v604 = vunpack.c.l.b16 %v46
    %v605 = vunpack.c.h.b16 %v46
    %v606 = vunpack.c.l.b16 %v47
    %v607 = vunpack.c.h.b16 %v47
    %v608 = vunpack.c.l.b16 %v48
    %v609 = vunpack.c.h.b16 %v48
    %v610 = vunpack.c.l.b16 %v49
    %v611 = vunpack.c.h.b16 %v49
    %v612 = vunpack.c.l.b16 %v50
    %v613 = vunpack.c.h.b16 %v50
    %v614 = vunpack.c.l.b16 %v51
    %v615 = vunpack.c.h.b16 %v51
    %v616 = vunpack.c.l.b16 %v52
    %v617 = vunpack.c.h.b16 %v52
    %v618 = vunpack.c.l.b16 %v53
    %v619 = vunpack.c.h.b16 %v53
    %v620 = vunpack.c.l.b16 %v54
    %v621 = vunpack.c.h.b16 %v54
    %v622 = vunpack.c.l.b16 %v55
    %v623 = vunpack.c.h.b16 %v55
    %v624 = vunpack.c.l.b16 %v56
    %v625 = vunpack.c.h.b16 %v56
    %v626 = vunpack.c.l.b16 %v57
    %v627 = vunpack.c.h.b16 %v57
    %v628 = vunpack.c.l.b16 %v58
    %v629 = vunpack.c.h.b16 %v58
    %v630 = vunpack.c.l.b16 %v59
    %v631 = vunpack.c.h.b16 %v59
    %v632 = vunpack.c.l.b16 %v60
    %v633 = vunpack.c.h.b16 %v60
    %v634 = vunpack.c.l.b16 %v61
    %v635 = vunpack.c.h.b16 %v61
    %v636 = vunpack.c.l.b16 %v62
    %v637 = vunpack.c.h.b16 %v62
    %v638 = vunpack.c.l.b16 %v63
    %v639 = vunpack.c.h.b16 %v63
    %v640 = vunpack.c.l.b16 %v64
    %v641 = vunpack.c.h.b16 %v64
    %v642 = vunpack.c.l.b16 %v65
    %v643 = vunpack.c.h.b16 %v65
    %v644 = vunpack.c.l.b16 %v66
    %v645 = vunpack.c.h.b16 %v66
    %v646 = vunpack.c.l.b16 %v67
    %v647 = vunpack.c.h.b16 %v67
    %v648 = vunpack.c.l.b16 %v68
    %v649 = vunpack.c.h.b16 %v68
    %v650 = vunpack.c.l.b16 %v69
    %v651 = vunpack.c.h.b16 %v69
    %v652 = vunpack.c.l.b16 %v70
    %v653 = vunpack.c.h.b16 %v70
    %v654 = vunpack.c.l.b16 %v71
    %v655 = vunpack.c.h.b16 %v71
    %v656 = vunpack.c.l.b16 %v72
    %v657 = vunpack.c.h.b16 %v72
    %v658 = vunpack.c.l.b16 %v73
    %v659 = vunpack.c.h.b16 %v73
    %v660 = vunpack.c.l.b16 %v74
    %v661 = vunpack.c.h.b16 %v74
    %v662 = vunpack.c.l.b16 %v75
    %v663 = vunpack.c.h.b16 %v75
    %v664 = vunpack.c.l.b16 %v76
    %v665 = vunpack.c.h.b16 %v76
    %v666 = vunpack.c.l.b16 %v77
    %v667 = vunpack.c.h.b16 %v77
    %v668 = vunpack.c.l.b16 %v78
    %v669 = vunpack.c.h.b16 %v78
    %v670 = vunpack.c.l.b16 %v79
    %v671 = vunpack.c.h.b16 %v79
    %v672 = vunpack.c.l.b16 %v80
    %v673 = vunpack.c.h.b16 %v80
    %v674 = vunpack.c.l.b16 %v81
    %v675 = vunpack.c.h.b16 %v81
    %v676 = vunpack.c.l.b16 %v82
    %v677 = vunpack.c.h.b16 %v82
    %v678 = vunpack.c.l.b16 %v83
    %v679 = vunpack.c.h.b16 %v83
    %v680 = vunpack.c.l.b16 %v84
    %v681 = vunpack.c.h.b16 %v84
    %v682 = vunpack.c.l.b16 %v85
    %v683 = vunpack.c.h.b16 %v85
    %v684 = vunpack.c.l.b16 %v86
    %v685 = vunpack.c.h.b16 %v86
    %v686 = vunpack.c.l.b16 %v87
    %v687 = vunpack.c.h.b16 %v87
    %v688 = vunpack.c.l.b16 %v88
    %v689 = vunpack.c.h.b16 %v88
    %v690 = vunpack.c.l.b16 %v89
    %v691 = vunpack.c.h.b16 %v89
    %v692 = vunpack.c.l.b16 %v90
    %v693 = vunpack.c.h.b16 %v90
    %v694 = vunpack.c.l.b16 %v91
    %v695 = vunpack.c.h.b16 %v91
    %v696 = vunpack.c.l.b16 %v92
    %v697 = vunpack.c.h.b16 %v92
    %v698 = vunpack.c.l.b16 %v93
    %v699 = vunpack.c.h.b16 %v93
    %v700 = vunpack.c.l.b16 %v94
    %v701 = vunpack.c.h.b16 %v94
    %v702 = vunpack.c.l.b16 %v95
    %v703 = vunpack.c.h.b16 %v95
    %v704 = vunpack.c.l.b16 %v96
    %v705 = vunpack.c.h.b16 %v96
    %v706 = vunpack.c.l.b16 %v97
    %v707 = vunpack.c.h.b16 %v97
    %v708 = vunpack.c.l.b16 %v98
    %v709 = vunpack.c.h.b16 %v98
    %v710 = vunpack.c.l.b16 %v99
    %v711 = vunpack.c.h.b16 %v99
    %v712 = vunpack.c.l.b16 %v100
    %v713 = vunpack.c.h.b16 %v100
    %v714 = vunpack.c.l.b16 %v101
    %v715 = vunpack.c.h.b16 %v101
    %v716 = vunpack.c.l.b16 %v102
    %v717 = vunpack.c.h.b16 %v102
    %v718 = vunpack.c.l.b16 %v103
    %v719 = vunpack.c.h.b16 %v103
    %v720 = vunpack.c.l.b16 %v104
    %v721 = vunpack.c.h.b16 %v104
    %v722 = vunpack.c.l.b16 %v105
    %v723 = vunpack.c.h.b16 %v105
    %v724 = vunpack.c.l.b16 %v106
    %v725 = vunpack.c.h.b16 %v106
    %v726 = vunpack.c.l.b16 %v107
    %v727 = vunpack.c.h.b16 %v107
    %v728 = vunpack.c.l.b16 %v108
    %v729 = vunpack.c.h.b16 %v108
    %v730 = vunpack.c.l.b16 %v109
    %v731 = vunpack.c.h.b16 %v109
    %v732 = vunpack.c.l.b16 %v110
    %v733 = vunpack.c.h.b16 %v110
    %v734 = vunpack.c.l.b16 %v111
    %v735 = vunpack.c.h.b16 %v111
    %v736 = vunpack.c.l.b16 %v112
    %v737 = vunpack.c.h.b16 %v112
    %v738 = vunpack.c.l.b16 %v113
    %v739 = vunpack.c.h.b16 %v113
    %v740 = vunpack.c.l.b16 %v114
    %v741 = vunpack.c.h.b16 %v114
    %v742 = vunpack.c.l.b16 %v115
    %v743 = vunpack.c.h.b16 %v115
    %v744 = vunpack.c.l.b16 %v116
    %v745 = vunpack.c.h.b16 %v116
    %v746 = vunpack.c.l.b16 %v117
    %v747 = vunpack.c.h.b16 %v117
    %v748 = vunpack.c.l.b16 %v118
    %v749 = vunpack.c.h.b16 %v118
    %v750 = vunpack.c.l.b16 %v119
    %v751 = vunpack.c.h.b16 %v119
    %v752 = vunpack.c.l.b16 %v120
    %v753 = vunpack.c.h.b16 %v120
    %v754 = vunpack.c.l.b16 %v121
    %v755 = vunpack.c.h.b16 %v121
    %v756 = vunpack.c.l.b16 %v122
    %v757 = vunpack.c.h.b16 %v122
    %v758 = vunpack.c.l.b16 %v123
    %v759 = vunpack.c.h.b16 %v123
    %v760 = vunpack.c.l.b16 %v124
    %v761 = vunpack.c.h.b16 %v124
    %v762 = vunpack.c.l.b16 %v125
    %v763 = vunpack.c.h.b16 %v125
    %v764 = vunpack.c.l.b16 %v126
    %v765 = vunpack.c.h.b16 %v126
    %v766 = vunpack.c.l.b16 %v127
    %v767 = vunpack.c.h.b16 %v127
    %v768 = vunpack.c.l.b16 %v128
    %v769 = vunpack.c.h.b16 %v128
    %v770 = vunpack.c.l.b16 %v129
    %v771 = vunpack.c.h.b16 %v129
    %v772 = vunpack.c.l.b16 %v130
    %v773 = vunpack.c.h.b16 %v130
    %v774 = vunpack.c.l.b16 %v131
    %v775 = vunpack.c.h.b16 %v131
    %v776 = vunpack.c.l.b16 %v132
    %v777 = vunpack.c.h.b16 %v132
    %v778 = vunpack.c.l.b16 %v133
    %v779 = vunpack.c.h.b16 %v133
    %v780 = vunpack.c.l.b16 %v134
    %v781 = vunpack.c.h.b16 %v134
    %v782 = vunpack.c.l.b16 %v135
    %v783 = vunpack.c.h.b16 %v135
    %v784 = vunpack.c.l.b16 %v136
    %v785 = vunpack.c.h.b16 %v136
    %v786 = vunpack.c.l.b16 %v137
    %v787 = vunpack.c.h.b16 %v137
    %v788 = vunpack.c.l.b16 %v138
    %v789 = vunpack.c.h.b16 %v138
    %v790 = vunpack.c.l.b16 %v139
    %v791 = vunpack.c.h.b16 %v139
    %v792 = vunpack.c.l.b16 %v140
    %v793 = vunpack.c.h.b16 %v140
    %v794 = vunpack.c.l.b16 %v141
    %v795 = vunpack.c.h.b16 %v141
    %v796 = vunpack.c.l.b16 %v142
    %v797 = vunpack.c.h.b16 %v142
    %v798 = vunpack.c.l.b16 %v143
    %v799 = vunpack.c.h.b16 %v143
    %v800 = vunpack.c.l.b16 %v144
    %v801 = vunpack.c.h.b16 %v144
    %v802 = vunpack.c.l.b16 %v145
    %v803 = vunpack.c.h.b16 %v145
    %v804 = vunpack.c.l.b16 %v146
    %v805 = vunpack.c.h.b16 %v146
    %v806 = vunpack.c.l.b16 %v147
    %v807 = vunpack.c.h.b16 %v147
    %v808 = vunpack.c.l.b16 %v148
    %v809 = vunpack.c.h.b16 %v148
    %v810 = vunpack.c.l.b16 %v149
    %v811 = vunpack.c.h.b16 %v149
    %v812 = vunpack.c.l.b16 %v150
    %v813 = vunpack.c.h.b16 %v150
    %v814 = vunpack.c.l.b16 %v151
    %v815 = vunpack.c.h.b16 %v151
    %v816 = vunpack.c.l.b16 %v152
    %v817 = vunpack.c.h.b16 %v152
    %v818 = vunpack.c.l.b16 %v153
    %v819 = vunpack.c.h.b16 %v153
    %v820 = vunpack.c.l.b16 %v154
    %v821 = vunpack.c.h.b16 %v154
    %v822 = vunpack.c.l.b16 %v155
    %v823 = vunpack.c.h.b16 %v155
    %v824 = vunpack.c.l.b16 %v156
    %v825 = vunpack.c.h.b16 %v156
    %v826 = vunpack.c.l.b16 %v157
    %v827 = vunpack.c.h.b16 %v157
    %v828 = vunpack.c.l.b16 %v158
    %v829 = vunpack.c.h.b16 %v158
    %v830 = vunpack.c.l.b16 %v159
    %v831 = vunpack.c.h.b16 %v159
    %v832 = vunpack.c.l.b16 %v160
    %v833 = vunpack.c.h.b16 %v160
    %v834 = vunpack.c.l.b16 %v161
    %v835 = vunpack.c.h.b16 %v161
    %v836 = vunpack.c.l.b16 %v162
    %v837 = vunpack.c.h.b16 %v162
    %v838 = vunpack.c.l.b16 %v163
    %v839 = vunpack.c.h.b16 %v163
    %v840 = vunpack.c.l.b16 %v164
    %v841 = vunpack.c.h.b16 %v164
    %v842 = vunpack.c.l.b16 %v165
    %v843 = vunpack.c.h.b16 %v165
    %v844 = vunpack.c.l.b16 %v166
    %v845 = vunpack.c.h.b16 %v166
    %v846 = vunpack.c.l.b16 %v167
    %v847 = vunpack.c.h.b16 %v167
    %v848 = vunpack.c.l.b16 %v168
    %v849 = vunpack.c.h.b16 %v168
    %v850 = vunpack.c.l.b16 %v169
    %v851 = vunpack.c.h.b16 %v169
    %v852 = vunpack.c.l.b16 %v170
    %v853 = vunpack.c.h.b16 %v170
    %v854 = vunpack.c.l.b16 %v171
    %v855 = vunpack.c.h.b16 %v171
    %v856 = vunpack.c.l.b16 %v172
    %v857 = vunpack.c.h.b16 %v172
    %v858 = vunpack.c.l.b16 %v173
    %v859 = vunpack.c.h.b16 %v173
    %v860 = vunpack.c.l.b16 %v174
    %v861 = vunpack.c.h.b16 %v174
    %v862 = vunpack.c.l.b16 %v175
    %v863 = vunpack.c.h.b16 %v175
    %v864 = vunpack.c.l.b16 %v176
    %v865 = vunpack.c.h.b16 %v176
    %v866 = vunpack.c.l.b16 %v177
    %v867 = vunpack.c.h.b16 %v177
    %v868 = vunpack.c.l.b16 %v178
    %v869 = vunpack.c.h.b16 %v178
    %v870 = vunpack.c.l.b16 %v179
    %v871 = vunpack.c.h.b16 %v179
    %v872 = vunpack.c.l.b16 %v180
    %v873 = vunpack.c.h.b16 %v180
    %v874 = vunpack.c.l.b16 %v181
    %v875 = vunpack.c.h.b16 %v181
    %v876 = vunpack.c.l.b16 %v182
    %v877 = vunpack.c.h.b16 %v182
    %v878 = vunpack.c.l.b16 %v183
    %v879 = vunpack.c.h.b16 %v183
    %v880 = vunpack.c.l.b16 %v184
    %v881 = vunpack.c.h.b16 %v184
    %v882 = vunpack.c.l.b16 %v185
    %v883 = vunpack.c.h.b16 %v185
    %v884 = vunpack.c.l.b16 %v186
    %v885 = vunpack.c.h.b16 %v186
    %v886 = vunpack.c.l.b16 %v187
    %v887 = vunpack.c.h.b16 %v187
    %v888 = vunpack.c.l.b16 %v188
    %v889 = vunpack.c.h.b16 %v188
    %v890 = vunpack.c.l.b16 %v189
    %v891 = vunpack.c.h.b16 %v189
    %v892 = vunpack.c.l.b16 %v190
    %v893 = vunpack.c.h.b16 %v190
    %v894 = vunpack.c.l.b16 %v191
    %v895 = vunpack.c.h.b16 %v191
    %v896 = vunpack.c.l.b16 %v192
    %v897 = vunpack.c.h.b16 %v192
    %v898 = vunpack.c.l.b16 %v193
    %v899 = vunpack.c.h.b16 %v193
    %v900 = vunpack.c.l.b16 %v194
    %v901 = vunpack.c.h.b16 %v194
    %v902 = vunpack.c.l.b16 %v195
    %v903 = vunpack.c.h.b16 %v195
    %v904 = vunpack.c.l.b16 %v196
    %v905 = vunpack.c.h.b16 %v196
    %v906 = vunpack.c.l.b16 %v197
    %v907 = vunpack.c.h.b16 %v197
    %v908 = vunpack.c.l.b16 %v198
    %v909 = vunpack.c.h.b16 %v198
    %v910 = vunpack.c.l.b16 %v199
    %v911 = vunpack.c.h.b16 %v199
    %v912 = vunpack.c.l.b16 %v200
    %v913 = vunpack.c.h.b16 %v200
    %v914 = vunpack.c.l.b16 %v201
    %v915 = vunpack.c.h.b16 %v201
    %v916 = vunpack.c.l.b16 %v202
    %v917 = vunpack.c.h.b16 %v202
    %v918 = vunpack.c.l.b16 %v203
    %v919 = vunpack.c.h.b16 %v203
    %v920 = vunpack.c.l.b16 %v204
    %v921 = vunpack.c.h.b16 %v204
    %v922 = vunpack.c.l.b16 %v205
    %v923 = vunpack.c.h.b16 %v205
    %v924 = vunpack.c.l.b16 %v206
    %v925 = vunpack.c.h.b16 %v206
    %v926 = vunpack.c.l.b16 %v207
    %v927 = vunpack.c.h.b16 %v207
    %v928 = vunpack.c.l.b16 %v208
    %v929 = vunpack.c.h.b16 %v208
    %v930 = vunpack.c.l.b16 %v209
    %v931 = vunpack.c.h.b16 %v209
    %v932 = vunpack.c.l.b16 %v210
    %v933 = vunpack.c.h.b16 %v210
    %v934 = vunpack.c.l.b16 %v211
    %v935 = vunpack.c.h.b16 %v211
    %v936 = vunpack.c.l.b16 %v212
    %v937 = vunpack.c.h.b16 %v212
    %v938 = vunpack.c.l.b16 %v213
    %v939 = vunpack.c.h.b16 %v213
    %v940 = vunpack.c.l.b16 %v214
    %v941 = vunpack.c.h.b16 %v214
    %v942 = vunpack.c.l.b16 %v215
    %v943 = vunpack.c.h.b16 %v215
    %v944 = vunpack.c.l.b16 %v216
    %v945 = vunpack.c.h.b16 %v216
    %v946 = vunpack.c.l.b16 %v217
    %v947 = vunpack.c.h.b16 %v217
    %v948 = vunpack.c.l.b16 %v218
    %v949 = vunpack.c.h.b16 %v218
    %v950 = vunpack.c.l.b16 %v219
    %v951 = vunpack.c.h.b16 %v219
    %v952 = vunpack.c.l.b16 %v220
    %v953 = vunpack.c.h.b16 %v220
    %v954 = vunpack.c.l.b16 %v221
    %v955 = vunpack.c.h.b16 %v221
    %v956 = vunpack.c.l.b16 %v222
    %v957 = vunpack.c.h.b16 %v222
    %v958 = vunpack.c.l.b16 %v223
    %v959 = vunpack.c.h.b16 %v223
    %v960 = vunpack.c.l.b16 %v224
    %v961 = vunpack.c.h.b16 %v224
    %v962 = vunpack.c.l.b16 %v225
    %v963 = vunpack.c.h.b16 %v225
    %v964 = vunpack.c.l.b16 %v226
    %v965 = vunpack.c.h.b16 %v226
    %v966 = vunpack.c.l.b16 %v227
    %v967 = vunpack.c.h.b16 %v227
    %v968 = vunpack.c.l.b16 %v228
    %v969 = vunpack.c.h.b16 %v228
    %v970 = vunpack.c.l.b16 %v229
    %v971 = vunpack.c.h.b16 %v229
    %v972 = vunpack.c.l.b16 %v230
    %v973 = vunpack.c.h.b16 %v230
    %v974 = vunpack.c.l.b16 %v231
    %v975 = vunpack.c.h.b16 %v231
    %v976 = vunpack.c.l.b16 %v232
    %v977 = vunpack.c.h.b16 %v232
    %v978 = vunpack.c.l.b16 %v233
    %v979 = vunpack.c.h.b16 %v233
    %v980 = vunpack.c.l.b16 %v234
    %v981 = vunpack.c.h.b16 %v234
    %v982 = vunpack.c.l.b16 %v235
    %v983 = vunpack.c.h.b16 %v235
    %v984 = vunpack.c.l.b16 %v236
    %v985 = vunpack.c.h.b16 %v236
    %v986 = vunpack.c.l.b16 %v237
    %v987 = vunpack.c.h.b16 %v237
    %v988 = vunpack.c.l.b16 %v238
    %v989 = vunpack.c.h.b16 %v238
    %v990 = vunpack.c.l.b16 %v239
    %v991 = vunpack.c.h.b16 %v239
    %v992 = vunpack.c.l.b16 %v240
    %v993 = vunpack.c.h.b16 %v240
    %v994 = vunpack.c.l.b16 %v241
    %v995 = vunpack.c.h.b16 %v241
    %v996 = vunpack.c.l.b16 %v242
    %v997 = vunpack.c.h.b16 %v242
    %v998 = vunpack.c.l.b16 %v243
    %v999 = vunpack.c.h.b16 %v243
    %v1000 = vunpack.c.l.b16 %v244
    %v1001 = vunpack.c.h.b16 %v244
    %v1002 = vunpack.c.l.b16 %v245
    %v1003 = vunpack.c.h.b16 %v245
    %v1004 = vunpack.c.l.b16 %v246
    %v1005 = vunpack.c.h.b16 %v246
    %v1006 = vunpack.c.l.b16 %v247
    %v1007 = vunpack.c.h.b16 %v247
    %v1008 = vunpack.c.l.b16 %v248
    %v1009 = vunpack.c.h.b16 %v248
    %v1010 = vunpack.c.l.b16 %v249
    %v1011 = vunpack.c.h.b16 %v249
    %v1012 = vunpack.c.l.b16 %v250
    %v1013 = vunpack.c.h.b16 %v250
    %v1014 = vunpack.c.l.b16 %v251
    %v1015 = vunpack.c.h.b16 %v251
    %v1016 = vunpack.c.l.b16 %v252
    %v1017 = vunpack.c.h.b16 %v252
    %v1018 = vunpack.c.l.b16 %v253
    %v1019 = vunpack.c.h.b16 %v253
    %v1020 = vunpack.c.l.b16 %v254
    %v1021 = vunpack.c.h.b16 %v254
    %v1022 = vunpack.c.l.b16 %v255
    %v1023 = vunpack.c.h.b16 %v255
    %v1024 = vunpack.c.l.b16 %v256
    %v1025 = vunpack.c.h.b16 %v256
    %v1026 = vunpack.c.l.b16 %v257
    %v1027 = vunpack.c.h.b16 %v257
    %v1028 = vunpack.c.l.b16 %v258
    %v1029 = vunpack.c.h.b16 %v258
    %v1030 = vunpack.c.l.b16 %v259
    %v1031 = vunpack.c.h.b16 %v259
    %v1032 = vunpack.c.l.b16 %v260
    %v1033 = vunpack.c.h.b16 %v260
    %v1034 = vunpack.c.l.b16 %v261
    %v1035 = vunpack.c.h.b16 %v261
    %v1036 = vunpack.c.l.b16 %v262
    %v1037 = vunpack.c.h.b16 %v262
    %v1038 = vunpack.c.l.b16 %v263
    %v1039 = vunpack.c.h.b16 %v263
    %v1040 = vunpack.c.l.b16 %v264
    %v1041 = vunpack.c.h.b16 %v264
    %v1042 = vunpack.c.l.b16 %v265
    %v1043 = vunpack.c.h.b16 %v265
    %v1044 = vunpack.c.l.b16 %v266
    %v1045 = vunpack.c.h.b16 %v266
    %v1046 = vunpack.c.l.b16 %v267
    %v1047 = vunpack.c.h.b16 %v267
    %v1048 = vunpack.c.l.b16 %v268
    %v1049 = vunpack.c.h.b16 %v268
    %v1050 = vunpack.c.l.b16 %v269
    %v1051 = vunpack.c.h.b16 %v269
    %v1052 = vunpack.c.l.b16 %v270
    %v1053 = vunpack.c.h.b16 %v270
    %v1054 = vunpack.c.l.b16 %v271
    %v1055 = vunpack.c.h.b16 %v271
    %v1056 = vunpack.c.l.b16 %v272
    %v1057 = vunpack.c.h.b16 %v272
    %v1058 = vunpack.c.l.b16 %v273
    %v1059 = vunpack.c.h.b16 %v273
    %v1060 = vunpack.c.l.b16 %v274
    %v1061 = vunpack.c.h.b16 %v274
    %v1062 = vunpack.c.l.b16 %v275
    %v1063 = vunpack.c.h.b16 %v275
    %v1064 = vunpack.c.l.b16 %v276
    %v1065 = vunpack.c.h.b16 %v276
    %v1066 = vunpack.c.l.b16 %v277
    %v1067 = vunpack.c.h.b16 %v277
    %v1068 = vunpack.c.l.b16 %v278
    %v1069 = vunpack.c.h.b16 %v278
    %v1070 = vunpack.c.l.b16 %v279
    %v1071 = vunpack.c.h.b16 %v279
    %v1072 = vunpack.c.l.b16 %v280
    %v1073 = vunpack.c.h.b16 %v280
    %v1074 = vunpack.c.l.b16 %v281
    %v1075 = vunpack.c.h.b16 %v281
    %v1076 = vunpack.c.l.b16 %v282
    %v1077 = vunpack.c.h.b16 %v282
    %v1078 = vunpack.c.l.b16 %v283
    %v1079 = vunpack.c.h.b16 %v283
    %v1080 = vunpack.c.l.b16 %v284
    %v1081 = vunpack.c.h.b16 %v284
    %v1082 = vunpack.c.l.b16 %v285
    %v1083 = vunpack.c.h.b16 %v285
    %v1084 = vunpack.c.l.b16 %v286
    %v1085 = vunpack.c.h.b16 %v286
    %v1086 = vunpack.c.l.b16 %v287
    %v1087 = vunpack.c.h.b16 %v287
    %v1088 = vunpack.c.l.b16 %v288
    %v1089 = vunpack.c.h.b16 %v288
    %v1090 = vunpack.c.l.b16 %v289
    %v1091 = vunpack.c.h.b16 %v289
    %v1092 = vunpack.c.l.b16 %v290
    %v1093 = vunpack.c.h.b16 %v290
    %v1094 = vunpack.c.l.b16 %v291
    %v1095 = vunpack.c.h.b16 %v291
    %v1096 = vunpack.c.l.b16 %v292
    %v1097 = vunpack.c.h.b16 %v292
    %v1098 = vunpack.c.l.b16 %v293
    %v1099 = vunpack.c.h.b16 %v293
    %v1100 = vunpack.c.l.b16 %v294
    %v1101 = vunpack.c.h.b16 %v294
    %v1102 = vunpack.c.l.b16 %v295
    %v1103 = vunpack.c.h.b16 %v295
    %v1104 = vunpack.c.l.b16 %v296
    %v1105 = vunpack.c.h.b16 %v296
    %v1106 = vunpack.c.l.b16 %v297
    %v1107 = vunpack.c.h.b16 %v297
    %v1108 = vpack.c.b16 %v604, %v596
    %v1109 = vpack.c.b16 %v605, %v597
    %v1110 = vpack.c.b16 %v606, %v598
    %v1111 = vpack.c.b16 %v607, %v599
    %v1112 = vpack.c.b16 %v608, %v600
    %v1113 = vpack.c.b16 %v609, %v601
    %v1114 = vpack.c.b16 %v610, %v602
    %v1115 = vpack.c.b16 %v611, %v603
    %v1116 = vpack.c.b16 %v620, %v612
    %v1117 = vpack.c.b16 %v621, %v613
    %v1118 = vpack.c.b16 %v622, %v614
    %v1119 = vpack.c.b16 %v623, %v615
    %v1120 = vpack.c.b16 %v624, %v616
    %v1121 = vpack.c.b16 %v625, %v617
    %v1122 = vpack.c.b16 %v626, %v618
    %v1123 = vpack.c.b16 %v627, %v619
    %v1124 = vpack.c.b16 %v636, %v628
    %v1125 = vpack.c.b16 %v637, %v629
    %v1126 = vpack.c.b16 %v638, %v630
    %v1127 = vpack.c.b16 %v639, %v631
    %v1128 = vpack.c.b16 %v640, %v632
    %v1129 = vpack.c.b16 %v641, %v633
    %v1130 = vpack.c.b16 %v642, %v634
    %v1131 = vpack.c.b16 %v643, %v635
    %v1132 = vpack.c.b16 %v652, %v644
    %v1133 = vpack.c.b16 %v653, %v645
    %v1134 = vpack.c.b16 %v654, %v646
    %v1135 = vpack.c.b16 %v655, %v647
    %v1136 = vpack.c.b16 %v656, %v648
    %v1137 = vpack.c.b16 %v657, %v649
    %v1138 = vpack.c.b16 %v658, %v650
    %v1139 = vpack.c.b16 %v659, %v651
    %v1140 = vpack.c.b16 %v668, %v660
    %v1141 = vpack.c.b16 %v669, %v661
    %v1142 = vpack.c.b16 %v670, %v662
    %v1143 = vpack.c.b16 %v671, %v663
    %v1144 = vpack.c.b16 %v672, %v664
    %v1145 = vpack.c.b16 %v673, %v665
    %v1146 = vpack.c.b16 %v674, %v666
    %v1147 = vpack.c.b16 %v675, %v667
    %v1148 = vpack.c.b16 %v684, %v676
    %v1149 = vpack.c.b16 %v685, %v677
    %v1150 = vpack.c.b16 %v686, %v678
    %v1151 = vpack.c.b16 %v687, %v679
    %v1152 = vpack.c.b16 %v688, %v680
    %v1153 = vpack.c.b16 %v689, %v681
    %v1154 = vpack.c.b16 %v690, %v682
    %v1155 = vpack.c.b16 %v691, %v683
    %v1156 = vpack.c.b16 %v700, %v692
    %v1157 = vpack.c.b16 %v701, %v693
    %v1158 = vpack.c.b16 %v702, %v694
    %v1159 = vpack.c.b16 %v703, %v695
    %v1160 = vpack.c.b16 %v704, %v696
    %v1161 = vpack.c.b16 %v705, %v697
    %v1162 = vpack.c.b16 %v706, %v698
    %v1163 = vpack.c.b16 %v707, %v699
    %v1164 = vpack.c.b16 %v716, %v708
    %v1165 = vpack.c.b16 %v717, %v709
    %v1166 = vpack.c.b16 %v718, %v710
    %v1167 = vpack.c.b16 %v719, %v711
    %v1168 = vpack.c.b16 %v720, %v712
    %v1169 = vpack.c.b16 %v721, %v713
    %v1170 = vpack.c.b16 %v722, %v714
    %v1171 = vpack.c.b16 %v723, %v715
    %v1172 = vpack.c.b16 %v732, %v724
    %v1173 = vpack.c.b16 %v733, %v725
    %v1174 = vpack.c.b16 %v734, %v726
    %v1175 = vpack.c.b16 %v735, %v727
    %v1176 = vpack.c.b16 %v736, %v728
    %v1177 = vpack.c.b16 %v737, %v729
    %v1178 = vpack.c.b16 %v738, %v730
    %v1179 = vpack.c.b16 %v739, %v731
    %v1180 = vpack.c.b16 %v748, %v740
    %v1181 = vpack.c.b16 %v749, %v741
    %v1182 = vpack.c.b16 %v750, %v742
    %v1183 = vpack.c.b16 %v751, %v743
    %v1184 = vpack.c.b16 %v752, %v744
    %v1185 = vpack.c.b16 %v753, %v745
    %v1186 = vpack.c.b16 %v754, %v746
    %v1187 = vpack.c.b16 %v755, %v747
    %v1188 = vpack.c.b16 %v764, %v756
    %v1189 = vpack.c.b16 %v765, %v757
    %v1190 = vpack.c.b16 %v766, %v758
    %v1191 = vpack.c.b16 %v767, %v759
    %v1192 = vpack.c.b16 %v768, %v760
    %v1193 = vpack.c.b16 %v769, %v761
    %v1194 = vpack.c.b16 %v770, %v762
    %v1195 = vpack.c.b16 %v771, %v763
    %v1196 = vpack.c.b16 %v780, %v772
    %v1197 = vpack.c.b16 %v781, %v773
    %v1198 = vpack.c.b16 %v782, %v774
    %v1199 = vpack.c.b16 %v783, %v775
    %v1200 = vpack.c.b16 %v784, %v776
    %v1201 = vpack.c.b16 %v785, %v777
    %v1202 = vpack.c.b16 %v786, %v778
    %v1203 = vpack.c.b16 %v787, %v779
    %v1204 = vpack.c.b16 %v796, %v788
    %v1205 = vpack.c.b16 %v797, %v789
    %v1206 = vpack.c.b16 %v798, %v790
    %v1207 = vpack.c.b16 %v799, %v791
    %v1208 = vpack.c.b16 %v800, %v792
    %v1209 = vpack.c.b16 %v801, %v793
    %v1210 = vpack.c.b16 %v802, %v794
    %v1211 = vpack.c.b16 %v803, %v795
    %v1212 = vpack.c.b16 %v812, %v804
    %v1213 = vpack.c.b16 %v813, %v805
    %v1214 = vpack.c.b16 %v814, %v806
    %v1215 = vpack.c.b16 %v815, %v807
    %v1216 = vpack.c.b16 %v816, %v808
    %v1217 = vpack.c.b16 %v817, %v809
    %v1218 = vpack.c.b16 %v818, %v810
    %v1219 = vpack.c.b16 %v819, %v811
    %v1220 = vpack.c.b16 %v828, %v820
    %v1221 = vpack.c.b16 %v829, %v821
    %v1222 = vpack.c.b16 %v830, %v822
    %v1223 = vpack.c.b16 %v831, %v823
    %v1224 = vpack.c.b16 %v832, %v824
    %v1225 = vpack.c.b16 %v833, %v825
    %v1226 = vpack.c.b16 %v834, %v826
    %v1227 = vpack.c.b16 %v835, %v827
    %v1228 = vpack.c.b16 %v844, %v836
    %v1229 = vpack.c.b16 %v845, %v837
    %v1230 = vpack.c.b16 %v846, %v838
    %v1231 = vpack.c.b16 %v847, %v839
    %v1232 = vpack.c.b16 %v848, %v840
    %v1233 = vpack.c.b16 %v849, %v841
    %v1234 = vpack.c.b16 %v850, %v842
    %v1235 = vpack.c.b16 %v851, %v843
    %v1236 = vpack.c.b16 %v860, %v852
    %v1237 = vpack.c.b16 %v861, %v853
    %v1238 = vpack.c.b16 %v862, %v854
    %v1239 = vpack.c.b16 %v863, %v855
    %v1240 = vpack.c.b16 %v864, %v856
    %v1241 = vpack.c.b16 %v865, %v857
    %v1242 = vpack.c.b16 %v866, %v858
    %v1243 = vpack.c.b16 %v867, %v859
    %v1244 = vpack.c.b16 %v876, %v868
    %v1245 = vpack.c.b16 %v877, %v869
    %v1246 = vpack.c.b16 %v878, %v870
    %v1247 = vpack.c.b16 %v879, %v871
    %v1248 = vpack.c.b16 %v880, %v872
    %v1249 = vpack.c.b16 %v881, %v873
    %v1250 = vpack.c.b16 %v882, %v874
    %v1251 = vpack.c.b16 %v883, %v875
    %v1252 = vpack.c.b16 %v892, %v884
    %v1253 = vpack.c.b16 %v893, %v885
    %v1254 = vpack.c.b16 %v894, %v886
    %v1255 = vpack.c.b16 %v895, %v887
    %v1256 = vpack.c.b16 %v896, %v888
    %v1257 = vpack.c.b16 %v897, %v889
    %v1258 = vpack.c.b16 %v898, %v890
    %v1259 = vpack.c.b16 %v899, %v891
    %v1260 = vpack.c.b16 %v908, %v900
    %v1261 = vpack.c.b16 %v909, %v901
    %v1262 = vpack.c.b16 %v910, %v902
    %v1263 = vpack.c.b16 %v911, %v903
    %v1264 = vpack.c.b16 %v912, %v904
    %v1265 = vpack.c.b16 %v913, %v905
    %v1266 = vpack.c.b16 %v914, %v906
    %v1267 = vpack.c.b16 %v915, %v907
    %v1268 = vpack.c.b16 %v924, %v916
    %v1269 = vpack.c.b16 %v925, %v917
    %v1270 = vpack.c.b16 %v926, %v918
    %v1271 = vpack.c.b16 %v927, %v919
    %v1272 = vpack.c.b16 %v928, %v920
    %v1273 = vpack.c.b16 %v929, %v921
    %v1274 = vpack.c.b16 %v930, %v922
    %v1275 = vpack.c.b16 %v931, %v923
    %v1276 = vpack.c.b16 %v940, %v932
    %v1277 = vpack.c.b16 %v941, %v933
    %v1278 = vpack.c.b16 %v942, %v934
    %v1279 = vpack.c.b16 %v943, %v935
    %v1280 = vpack.c.b16 %v944, %v936
    %v1281 = vpack.c.b16 %v945, %v937
    %v1282 = vpack.c.b16 %v946, %v938
    %v1283 = vpack.c.b16 %v947, %v939
    %v1284 = vpack.c.b16 %v956, %v948
    %v1285 = vpack.c.b16 %v957, %v949
    %v1286 = vpack.c.b16 %v958, %v950
    %v1287 = vpack.c.b16 %v959, %v951
    %v1288 = vpack.c.b16 %v960, %v952
    %v1289 = vpack.c.b16 %v961, %v953
    %v1290 = vpack.c.b16 %v962, %v954
    %v1291 = vpack.c.b16 %v963, %v955
    %v1292 = vpack.c.b16 %v972, %v964
    %v1293 = vpack.c.b16 %v973, %v965
    %v1294 = vpack.c.b16 %v974, %v966
    %v1295 = vpack.c.b16 %v975, %v967
    %v1296 = vpack.c.b16 %v976, %v968
    %v1297 = vpack.c.b16 %v977, %v969
    %v1298 = vpack.c.b16 %v978, %v970
    %v1299 = vpack.c.b16 %v979, %v971
    %v1300 = vpack.c.b16 %v988, %v980
    %v1301 = vpack.c.b16 %v989, %v981
    %v1302 = vpack.c.b16 %v990, %v982
    %v1303 = vpack.c.b16 %v991, %v983
    %v1304 = vpack.c.b16 %v992, %v984
    %v1305 = vpack.c.b16 %v993, %v985
    %v1306 = vpack.c.b16 %v994, %v986
    %v1307 = vpack.c.b16 %v995, %v987
    %v1308 = vpack.c.b16 %v1004, %v996
    %v1309 = vpack.c.b16 %v1005, %v997
    %v1310 = vpack.c.b16 %v1006, %v998
    %v1311 = vpack.c.b16 %v1007, %v999
    %v1312 = vpack.c.b16 %v1008, %v1000
    %v1313 = vpack.c.b16 %v1009, %v1001
    %v1314 = vpack.c.b16 %v1010, %v1002
    %v1315 = vpack.c.b16 %v1011, %v1003
    %v1316 = vpack.c.b16 %v1020, %v1012
    %v1317 = vpack.c.b16 %v1021, %v1013
    %v1318 = vpack.c.b16 %v1022, %v1014
    %v1319 = vpack.c.b16 %v1023, %v1015
    %v1320 = vpack.c.b16 %v1024, %v1016
    %v1321 = vpack.c.b16 %v1025, %v1017
    %v1322 = vpack.c.b16 %v1026, %v1018
    %v1323 = vpack.c.b16 %v1027, %v1019
    %v1324 = vpack.c.b16 %v1036, %v1028
    %v1325 = vpack.c.b16 %v1037, %v1029
    %v1326 = vpack.c.b16 %v1038, %v1030
    %v1327 = vpack.c.b16 %v1039, %v1031
    %v1328 = vpack.c.b16 %v1040, %v1032
    %v1329 = vpack.c.b16 %v1041, %v1033
    %v1330 = vpack.c.b16 %v1042, %v1034
    %v1331 = vpack.c.b16 %v1043, %v1035
    %v1332 = vpack.c.b16 %v1052, %v1044
    %v1333 = vpack.c.b16 %v1053, %v1045
    %v1334 = vpack.c.b16 %v1054, %v1046
    %v1335 = vpack.c.b16 %v1055, %v1047
    %v1336 = vpack.c.b16 %v1056, %v1048
    %v1337 = vpack.c.b16 %v1057, %v1049
    %v1338 = vpack.c.b16 %v1058, %v1050
    %v1339 = vpack.c.b16 %v1059, %v1051
    %v1340 = vpack.c.b16 %v1068, %v1060
    %v1341 = vpack.c.b16 %v1069, %v1061
    %v1342 = vpack.c.b16 %v1070, %v1062
    %v1343 = vpack.c.b16 %v1071, %v1063
    %v1344 = vpack.c.b16 %v1072, %v1064
    %v1345 = vpack.c.b16 %v1073, %v1065
    %v1346 = vpack.c.b16 %v1074, %v1066
    %v1347 = vpack.c.b16 %v1075, %v1067
    %v1348 = vpack.c.b16 %v1084, %v1076
    %v1349 = vpack.c.b16 %v1085, %v1077
    %v1350 = vpack.c.b16 %v1086, %v1078
    %v1351 = vpack.c.b16 %v1087, %v1079
    %v1352 = vpack.c.b16 %v1088, %v1080
    %v1353 = vpack.c.b16 %v1089, %v1081
    %v1354 = vpack.c.b16 %v1090, %v1082
    %v1355 = vpack.c.b16 %v1091, %v1083
    %v1356 = vpack.c.b16 %v1100, %v1092
    %v1357 = vpack.c.b16 %v1101, %v1093
    %v1358 = vpack.c.b16 %v1102, %v1094
    %v1359 = vpack.c.b16 %v1103, %v1095
    %v1360 = vpack.c.b16 %v1104, %v1096
    %v1361 = vpack.c.b16 %v1105, %v1097
    %v1362 = vpack.c.b16 %v1106, %v1098
    %v1363 = vpack.c.b16 %v1107, %v1099
    %1620 = vmatprep.subr.bf16.mxu0 %v1165
    %1621 = vmatpush1.bf16.msra.mxu0 %v1164
    %1622 = vmatprep.subr.bf16.mxu0 %v1157
    %1623 = vmatpush1.bf16.msra.mxu0 %v1156
    %1624 = vmatprep.subr.bf16.mxu0 %v1149
    %1625 = vmatpush1.bf16.msra.mxu0 %v1148
    %1626 = vmatprep.subr.bf16.mxu0 %v1141
    %1627 = vmatpush1.bf16.msra.mxu0 %v1140
    %1628 = vmatprep.subr.bf16.mxu0 %v1133
    %1629 = vmatpush1.bf16.msra.mxu0 %v1132
    %1630 = vmatprep.subr.bf16.mxu0 %v1125
    %1631 = vmatpush1.bf16.msra.mxu0 %v1124
    %1632 = vmatprep.subr.bf16.mxu0 %v1117
    %1633 = vmatpush1.bf16.msra.mxu0 %v1116
    %1634 = vmatprep.subr.bf16.mxu0 %v1109
    %1635 = vmatpush1.bf16.msra.mxu0 %v1108
    %1636 = vmatprep.subr.bf16.mxu0 %v1229
    %1637 = vmatpush2.bf16.msra.mxu0 %v1228
    %1638 = vmatprep.subr.bf16.mxu0 %v1221
    %1639 = vmatpush2.bf16.msra.mxu0 %v1220
    %1640 = vmatprep.subr.bf16.mxu0 %v1213
    %1641 = vmatpush2.bf16.msra.mxu0 %v1212
    %1642 = vmatprep.subr.bf16.mxu0 %v1205
    %1643 = vmatpush2.bf16.msra.mxu0 %v1204
    %1644 = vmatprep.subr.bf16.mxu0 %v1197
    %1645 = vmatpush2.bf16.msra.mxu0 %v1196
    %1646 = vmatprep.subr.bf16.mxu0 %v1189
    %1647 = vmatpush2.bf16.msra.mxu0 %v1188
    %1648 = vmatprep.subr.bf16.mxu0 %v1181
    %1649 = vmatpush2.bf16.msra.mxu0 %v1180
    %1650 = vmatprep.subr.bf16.mxu0 %v1173
    %1651 = vmatpush2.bf16.msra.mxu0 %v1172
    %1652 = vmatprep.mubr.bf16.mxu0 %v39
    %1653 = vmatmul.mubr.bf16.gmra.mxu0 %v38
    %v1654 = vpop.f32.mrf.mxu0
    %v1655 = vadd.f32 %v303, %v1654
    %v1656 = vpop.f32.mrf.mxu0
    %v1657 = vadd.f32 %v307, %v1656
    %v1658 = vpop.f32.mrf.mxu0
    %v1659 = vpop.f32.mrf.mxu0
    %1660 = vdwg.mxu0
    %1661 = vmatprep.subr.bf16.mxu0 %v1293
    %1662 = vmatpush1.bf16.msra.mxu0 %v1292
    %1663 = vmatprep.subr.bf16.mxu0 %v1285
    %1664 = vmatpush1.bf16.msra.mxu0 %v1284
    %1665 = vmatprep.subr.bf16.mxu0 %v1277
    %1666 = vmatpush1.bf16.msra.mxu0 %v1276
    %1667 = vmatprep.subr.bf16.mxu0 %v1269
    %1668 = vmatpush1.bf16.msra.mxu0 %v1268
    %1669 = vmatprep.subr.bf16.mxu0 %v1261
    %1670 = vmatpush1.bf16.msra.mxu0 %v1260
    %1671 = vmatprep.subr.bf16.mxu0 %v1253
    %1672 = vmatpush1.bf16.msra.mxu0 %v1252
    %1673 = vmatprep.subr.bf16.mxu0 %v1245
    %1674 = vmatpush1.bf16.msra.mxu0 %v1244
    %1675 = vmatprep.subr.bf16.mxu0 %v1237
    %1676 = vmatpush1.bf16.msra.mxu0 %v1236
    %1677 = vmatprep.subr.bf16.mxu0 %v1357
    %1678 = vmatpush2.bf16.msra.mxu0 %v1356
    %1679 = vmatprep.subr.bf16.mxu0 %v1349
    %1680 = vmatpush2.bf16.msra.mxu0 %v1348
    %1681 = vmatprep.subr.bf16.mxu0 %v1341
    %1682 = vmatpush2.bf16.msra.mxu0 %v1340
    %1683 = vmatprep.subr.bf16.mxu0 %v1333
    %1684 = vmatpush2.bf16.msra.mxu0 %v1332
    %1685 = vmatprep.subr.bf16.mxu0 %v1325
    %1686 = vmatpush2.bf16.msra.mxu0 %v1324
    %1687 = vmatprep.subr.bf16.mxu0 %v1317
    %1688 = vmatpush2.bf16.msra.mxu0 %v1316
    %1689 = vmatprep.subr.bf16.mxu0 %v1309
    %1690 = vmatpush2.bf16.msra.mxu0 %v1308
    %1691 = vmatprep.subr.bf16.mxu0 %v1301
    %1692 = vmatpush2.bf16.msra.mxu0 %v1300
    %1693 = vmatprep.mubr.bf16.mxu0 %v41
    %1694 = vmatmul.mubr.bf16.gmra.mxu0 %v40
    %v1695 = vpop.f32.mrf.mxu0
    %v1696 = vadd.f32 %v1655, %v1695
    %v1697 = vpop.f32.mrf.mxu0
    %v1698 = vadd.f32 %v1657, %v1697
    %v1699 = vpop.f32.mrf.mxu0
    %v1700 = vpop.f32.mrf.mxu0
    %1701 = vdwg.mxu0
    %1702 = vmatprep.subr.bf16.mxu0 %v1167
    %1703 = vmatpush1.bf16.msra.mxu0 %v1166
    %1704 = vmatprep.subr.bf16.mxu0 %v1159
    %1705 = vmatpush1.bf16.msra.mxu0 %v1158
    %1706 = vmatprep.subr.bf16.mxu0 %v1151
    %1707 = vmatpush1.bf16.msra.mxu0 %v1150
    %1708 = vmatprep.subr.bf16.mxu0 %v1143
    %1709 = vmatpush1.bf16.msra.mxu0 %v1142
    %1710 = vmatprep.subr.bf16.mxu0 %v1135
    %1711 = vmatpush1.bf16.msra.mxu0 %v1134
    %1712 = vmatprep.subr.bf16.mxu0 %v1127
    %1713 = vmatpush1.bf16.msra.mxu0 %v1126
    %1714 = vmatprep.subr.bf16.mxu0 %v1119
    %1715 = vmatpush1.bf16.msra.mxu0 %v1118
    %1716 = vmatprep.subr.bf16.mxu0 %v1111
    %1717 = vmatpush1.bf16.msra.mxu0 %v1110
    %1718 = vmatprep.subr.bf16.mxu0 %v1231
    %1719 = vmatpush2.bf16.msra.mxu0 %v1230
    %1720 = vmatprep.subr.bf16.mxu0 %v1223
    %1721 = vmatpush2.bf16.msra.mxu0 %v1222
    %1722 = vmatprep.subr.bf16.mxu0 %v1215
    %1723 = vmatpush2.bf16.msra.mxu0 %v1214
    %1724 = vmatprep.subr.bf16.mxu0 %v1207
    %1725 = vmatpush2.bf16.msra.mxu0 %v1206
    %1726 = vmatprep.subr.bf16.mxu0 %v1199
    %1727 = vmatpush2.bf16.msra.mxu0 %v1198
    %1728 = vmatprep.subr.bf16.mxu0 %v1191
    %1729 = vmatpush2.bf16.msra.mxu0 %v1190
    %1730 = vmatprep.subr.bf16.mxu0 %v1183
    %1731 = vmatpush2.bf16.msra.mxu0 %v1182
    %1732 = vmatprep.subr.bf16.mxu0 %v1175
    %1733 = vmatpush2.bf16.msra.mxu0 %v1174
    %1734 = vmatprep.mubr.bf16.mxu0 %v39
    %1735 = vmatmul.mubr.bf16.gmra.mxu0 %v38
    %v1736 = vpop.f32.mrf.mxu0
    %v1737 = vadd.f32 %v311, %v1736
    %v1738 = vpop.f32.mrf.mxu0
    %v1739 = vadd.f32 %v315, %v1738
    %v1740 = vpop.f32.mrf.mxu0
    %v1741 = vpop.f32.mrf.mxu0
    %1742 = vdwg.mxu0
    %1743 = vmatprep.subr.bf16.mxu0 %v1295
    %1744 = vmatpush1.bf16.msra.mxu0 %v1294
    %1745 = vmatprep.subr.bf16.mxu0 %v1287
    %1746 = vmatpush1.bf16.msra.mxu0 %v1286
    %1747 = vmatprep.subr.bf16.mxu0 %v1279
    %1748 = vmatpush1.bf16.msra.mxu0 %v1278
    %1749 = vmatprep.subr.bf16.mxu0 %v1271
    %1750 = vmatpush1.bf16.msra.mxu0 %v1270
    %1751 = vmatprep.subr.bf16.mxu0 %v1263
    %1752 = vmatpush1.bf16.msra.mxu0 %v1262
    %1753 = vmatprep.subr.bf16.mxu0 %v1255
    %1754 = vmatpush1.bf16.msra.mxu0 %v1254
    %1755 = vmatprep.subr.bf16.mxu0 %v1247
    %1756 = vmatpush1.bf16.msra.mxu0 %v1246
    %1757 = vmatprep.subr.bf16.mxu0 %v1239
    %1758 = vmatpush1.bf16.msra.mxu0 %v1238
    %1759 = vmatprep.subr.bf16.mxu0 %v1359
    %1760 = vmatpush2.bf16.msra.mxu0 %v1358
    %1761 = vmatprep.subr.bf16.mxu0 %v1351
    %1762 = vmatpush2.bf16.msra.mxu0 %v1350
    %1763 = vmatprep.subr.bf16.mxu0 %v1343
    %1764 = vmatpush2.bf16.msra.mxu0 %v1342
    %1765 = vmatprep.subr.bf16.mxu0 %v1335
    %1766 = vmatpush2.bf16.msra.mxu0 %v1334
    %1767 = vmatprep.subr.bf16.mxu0 %v1327
    %1768 = vmatpush2.bf16.msra.mxu0 %v1326
    %1769 = vmatprep.subr.bf16.mxu0 %v1319
    %1770 = vmatpush2.bf16.msra.mxu0 %v1318
    %1771 = vmatprep.subr.bf16.mxu0 %v1311
    %1772 = vmatpush2.bf16.msra.mxu0 %v1310
    %1773 = vmatprep.subr.bf16.mxu0 %v1303
    %1774 = vmatpush2.bf16.msra.mxu0 %v1302
    %1775 = vmatprep.mubr.bf16.mxu0 %v41
    %1776 = vmatmul.mubr.bf16.gmra.mxu0 %v40
    %v1777 = vpop.f32.mrf.mxu0
    %v1778 = vadd.f32 %v1737, %v1777
    %v1779 = vpop.f32.mrf.mxu0
    %v1780 = vadd.f32 %v1739, %v1779
    %v1781 = vpop.f32.mrf.mxu0
    %v1782 = vpop.f32.mrf.mxu0
    %1783 = vdwg.mxu0
    %1784 = vmatprep.subr.bf16.mxu0 %v1169
    %1785 = vmatpush1.bf16.msra.mxu0 %v1168
    %1786 = vmatprep.subr.bf16.mxu0 %v1161
    %1787 = vmatpush1.bf16.msra.mxu0 %v1160
    %1788 = vmatprep.subr.bf16.mxu0 %v1153
    %1789 = vmatpush1.bf16.msra.mxu0 %v1152
    %1790 = vmatprep.subr.bf16.mxu0 %v1145
    %1791 = vmatpush1.bf16.msra.mxu0 %v1144
    %1792 = vmatprep.subr.bf16.mxu0 %v1137
    %1793 = vmatpush1.bf16.msra.mxu0 %v1136
    %1794 = vmatprep.subr.bf16.mxu0 %v1129
    %1795 = vmatpush1.bf16.msra.mxu0 %v1128
    %1796 = vmatprep.subr.bf16.mxu0 %v1121
    %1797 = vmatpush1.bf16.msra.mxu0 %v1120
    %1798 = vmatprep.subr.bf16.mxu0 %v1113
    %1799 = vmatpush1.bf16.msra.mxu0 %v1112
    %1800 = vmatprep.subr.bf16.mxu0 %v1233
    %1801 = vmatpush2.bf16.msra.mxu0 %v1232
    %1802 = vmatprep.subr.bf16.mxu0 %v1225
    %1803 = vmatpush2.bf16.msra.mxu0 %v1224
    %1804 = vmatprep.subr.bf16.mxu0 %v1217
    %1805 = vmatpush2.bf16.msra.mxu0 %v1216
    %1806 = vmatprep.subr.bf16.mxu0 %v1209
    %1807 = vmatpush2.bf16.msra.mxu0 %v1208
    %1808 = vmatprep.subr.bf16.mxu0 %v1201
    %1809 = vmatpush2.bf16.msra.mxu0 %v1200
    %1810 = vmatprep.subr.bf16.mxu0 %v1193
    %1811 = vmatpush2.bf16.msra.mxu0 %v1192
    %1812 = vmatprep.subr.bf16.mxu0 %v1185
    %1813 = vmatpush2.bf16.msra.mxu0 %v1184
    %1814 = vmatprep.subr.bf16.mxu0 %v1177
    %1815 = vmatpush2.bf16.msra.mxu0 %v1176
    %1816 = vmatprep.mubr.bf16.mxu0 %v39
    %1817 = vmatmul.mubr.bf16.gmra.mxu0 %v38
    %v1818 = vpop.f32.mrf.mxu0
    %v1819 = vadd.f32 %v319, %v1818
    %v1820 = vpop.f32.mrf.mxu0
    %v1821 = vadd.f32 %v323, %v1820
    %v1822 = vpop.f32.mrf.mxu0
    %v1823 = vpop.f32.mrf.mxu0
    %1824 = vdwg.mxu0
    %1825 = vmatprep.subr.bf16.mxu0 %v1297
    %1826 = vmatpush1.bf16.msra.mxu0 %v1296
    %1827 = vmatprep.subr.bf16.mxu0 %v1289
    %1828 = vmatpush1.bf16.msra.mxu0 %v1288
    %1829 = vmatprep.subr.bf16.mxu0 %v1281
    %1830 = vmatpush1.bf16.msra.mxu0 %v1280
    %1831 = vmatprep.subr.bf16.mxu0 %v1273
    %1832 = vmatpush1.bf16.msra.mxu0 %v1272
    %1833 = vmatprep.subr.bf16.mxu0 %v1265
    %1834 = vmatpush1.bf16.msra.mxu0 %v1264
    %1835 = vmatprep.subr.bf16.mxu0 %v1257
    %1836 = vmatpush1.bf16.msra.mxu0 %v1256
    %1837 = vmatprep.subr.bf16.mxu0 %v1249
    %1838 = vmatpush1.bf16.msra.mxu0 %v1248
    %1839 = vmatprep.subr.bf16.mxu0 %v1241
    %1840 = vmatpush1.bf16.msra.mxu0 %v1240
    %1841 = vmatprep.subr.bf16.mxu0 %v1361
    %1842 = vmatpush2.bf16.msra.mxu0 %v1360
    %1843 = vmatprep.subr.bf16.mxu0 %v1353
    %1844 = vmatpush2.bf16.msra.mxu0 %v1352
    %1845 = vmatprep.subr.bf16.mxu0 %v1345
    %1846 = vmatpush2.bf16.msra.mxu0 %v1344
    %1847 = vmatprep.subr.bf16.mxu0 %v1337
    %1848 = vmatpush2.bf16.msra.mxu0 %v1336
    %1849 = vmatprep.subr.bf16.mxu0 %v1329
    %1850 = vmatpush2.bf16.msra.mxu0 %v1328
    %1851 = vmatprep.subr.bf16.mxu0 %v1321
    %1852 = vmatpush2.bf16.msra.mxu0 %v1320
    %1853 = vmatprep.subr.bf16.mxu0 %v1313
    %1854 = vmatpush2.bf16.msra.mxu0 %v1312
    %1855 = vmatprep.subr.bf16.mxu0 %v1305
    %1856 = vmatpush2.bf16.msra.mxu0 %v1304
    %1857 = vmatprep.mubr.bf16.mxu0 %v41
    %1858 = vmatmul.mubr.bf16.gmra.mxu0 %v40
    %v1859 = vpop.f32.mrf.mxu0
    %v1860 = vadd.f32 %v1819, %v1859
    %v1861 = vpop.f32.mrf.mxu0
    %v1862 = vadd.f32 %v1821, %v1861
    %v1863 = vpop.f32.mrf.mxu0
    %v1864 = vpop.f32.mrf.mxu0
    %1865 = vdwg.mxu0
    %1866 = vmatprep.subr.bf16.mxu0 %v1171
    %1867 = vmatpush1.bf16.msra.mxu0 %v1170
    %1868 = vmatprep.subr.bf16.mxu0 %v1163
    %1869 = vmatpush1.bf16.msra.mxu0 %v1162
    %1870 = vmatprep.subr.bf16.mxu0 %v1155
    %1871 = vmatpush1.bf16.msra.mxu0 %v1154
    %1872 = vmatprep.subr.bf16.mxu0 %v1147
    %1873 = vmatpush1.bf16.msra.mxu0 %v1146
    %1874 = vmatprep.subr.bf16.mxu0 %v1139
    %1875 = vmatpush1.bf16.msra.mxu0 %v1138
    %1876 = vmatprep.subr.bf16.mxu0 %v1131
    %1877 = vmatpush1.bf16.msra.mxu0 %v1130
    %1878 = vmatprep.subr.bf16.mxu0 %v1123
    %1879 = vmatpush1.bf16.msra.mxu0 %v1122
    %1880 = vmatprep.subr.bf16.mxu0 %v1115
    %1881 = vmatpush1.bf16.msra.mxu0 %v1114
    %1882 = vmatprep.subr.bf16.mxu0 %v1235
    %1883 = vmatpush2.bf16.msra.mxu0 %v1234
    %1884 = vmatprep.subr.bf16.mxu0 %v1227
    %1885 = vmatpush2.bf16.msra.mxu0 %v1226
    %1886 = vmatprep.subr.bf16.mxu0 %v1219
    %1887 = vmatpush2.bf16.msra.mxu0 %v1218
    %1888 = vmatprep.subr.bf16.mxu0 %v1211
    %1889 = vmatpush2.bf16.msra.mxu0 %v1210
    %1890 = vmatprep.subr.bf16.mxu0 %v1203
    %1891 = vmatpush2.bf16.msra.mxu0 %v1202
    %1892 = vmatprep.subr.bf16.mxu0 %v1195
    %1893 = vmatpush2.bf16.msra.mxu0 %v1194
    %1894 = vmatprep.subr.bf16.mxu0 %v1187
    %1895 = vmatpush2.bf16.msra.mxu0 %v1186
    %1896 = vmatprep.subr.bf16.mxu0 %v1179
    %1897 = vmatpush2.bf16.msra.mxu0 %v1178
    %1898 = vmatprep.mubr.bf16.mxu0 %v39
    %1899 = vmatmul.mubr.bf16.gmra.mxu0 %v38
    %v1900 = vpop.f32.mrf.mxu0
    %v1901 = vadd.f32 %v327, %v1900
    %v1902 = vpop.f32.mrf.mxu0
    %v1903 = vadd.f32 %v331, %v1902
    %v1904 = vpop.f32.mrf.mxu0
    %v1905 = vpop.f32.mrf.mxu0
    %1906 = vdwg.mxu0
    %1907 = vmatprep.subr.bf16.mxu0 %v1299
    %1908 = vmatpush1.bf16.msra.mxu0 %v1298
    %1909 = vmatprep.subr.bf16.mxu0 %v1291
    %1910 = vmatpush1.bf16.msra.mxu0 %v1290
    %1911 = vmatprep.subr.bf16.mxu0 %v1283
    %1912 = vmatpush1.bf16.msra.mxu0 %v1282
    %1913 = vmatprep.subr.bf16.mxu0 %v1275
    %1914 = vmatpush1.bf16.msra.mxu0 %v1274
    %1915 = vmatprep.subr.bf16.mxu0 %v1267
    %1916 = vmatpush1.bf16.msra.mxu0 %v1266
    %1917 = vmatprep.subr.bf16.mxu0 %v1259
    %1918 = vmatpush1.bf16.msra.mxu0 %v1258
    %1919 = vmatprep.subr.bf16.mxu0 %v1251
    %1920 = vmatpush1.bf16.msra.mxu0 %v1250
    %1921 = vmatprep.subr.bf16.mxu0 %v1243
    %1922 = vmatpush1.bf16.msra.mxu0 %v1242
    %1923 = vmatprep.subr.bf16.mxu0 %v1363
    %1924 = vmatpush2.bf16.msra.mxu0 %v1362
    %1925 = vmatprep.subr.bf16.mxu0 %v1355
    %1926 = vmatpush2.bf16.msra.mxu0 %v1354
    %1927 = vmatprep.subr.bf16.mxu0 %v1347
    %1928 = vmatpush2.bf16.msra.mxu0 %v1346
    %1929 = vmatprep.subr.bf16.mxu0 %v1339
    %1930 = vmatpush2.bf16.msra.mxu0 %v1338
    %1931 = vmatprep.subr.bf16.mxu0 %v1331
    %1932 = vmatpush2.bf16.msra.mxu0 %v1330
    %1933 = vmatprep.subr.bf16.mxu0 %v1323
    %1934 = vmatpush2.bf16.msra.mxu0 %v1322
    %1935 = vmatprep.subr.bf16.mxu0 %v1315
    %1936 = vmatpush2.bf16.msra.mxu0 %v1314
    %1937 = vmatprep.subr.bf16.mxu0 %v1307
    %1938 = vmatpush2.bf16.msra.mxu0 %v1306
    %1939 = vmatprep.mubr.bf16.mxu0 %v41
    %1940 = vmatmul.mubr.bf16.gmra.mxu0 %v40
    %v1941 = vpop.f32.mrf.mxu0
    %v1942 = vadd.f32 %v1901, %v1941
    %v1943 = vpop.f32.mrf.mxu0
    %v1944 = vadd.f32 %v1903, %v1943
    %v1945 = vpop.f32.mrf.mxu0
    %v1946 = vpop.f32.mrf.mxu0
    %1947 = vdwg.mxu0
    %v1956 = vcombine.low %v1696, %v1698
    %v1957 = vcombine.low %v1778, %v1780
    %v1959 = vunpack.c.l.s4 1983009808
    %v1960 = vunpack.c.0.s8 %v1959
    %v1961 = vlaneseq
    %v1962 = vshrl.u32 %v1961, 7
    %v1963 = vsub.s32 %v1960, %v1962
    %v1964 = vrot.slane %v1956, %v1963
    %v1966 = vunpack.c.l.s4 1983009808
    %v1967 = vunpack.c.0.s8 %v1966
    %v1968 = vlaneseq
    %v1969 = vshrl.u32 %v1968, 7
    %v1970 = vsub.s32 %v1967, %v1969
    %v1971 = vrot.slane %v1957, %v1970
    %v1972 = vcombine.low %v1964, %v1971
    %v1973 = vcombine.low %v1860, %v1862
    %v1974 = vcombine.low %v1942, %v1944
    %v1976 = vunpack.c.l.s4 1983009808
    %v1977 = vunpack.c.0.s8 %v1976
    %v1978 = vlaneseq
    %v1979 = vshrl.u32 %v1978, 7
    %v1980 = vsub.s32 %v1977, %v1979
    %v1981 = vrot.slane %v1973, %v1980
    %v1983 = vunpack.c.l.s4 1983009808
    %v1984 = vunpack.c.0.s8 %v1983
    %v1985 = vlaneseq
    %v1986 = vshrl.u32 %v1985, 7
    %v1987 = vsub.s32 %v1984, %v1986
    %v1988 = vrot.slane %v1974, %v1987
    %v1989 = vcombine.low %v1981, %v1988
    %1992 = vst [vmem:[#allocation2] sm:$0xff] %v1972
    %vm1993 = vcmask 1041408
    %vm1994 = vcmask 1043458
    %vm1995 = vmor %vm1994, %vm1993
    %vm1996 = vcmask 1045508
    %vm1997 = vmor %vm1996, %vm1995
    %vm1998 = vcmask 850950
    %vm1999 = vmor %vm1998, %vm1997
    %2000 = vst.msk [vmem:[#allocation2 + $0x8] sm:$0xff] %vm1999, %v1989
    // Predicated region
    $region14: #{fc_pallas.1} parent=1 // pred_check
      _
    $region15: #{fc_pallas.1} parent=1 // pred_check_branch
      %2002 = sbr.rel (0) target = $region17
    $region16: #{fc_pallas.1} parent=1 // pred_region
      %s2004 = ssub.s32 256, 256
      %2005 = vsyncadd [#allocation3], %s2004
      %s2007 = sshll.u32 [#allocation2], 4
      %s2008 = int_to_ptr.vmem [resolvable:$true] %s2007
      %2010 = dma.vmem_to_hbm [thread:$0]  %s2008, 256, %s3, [#allocation3]
    $region17: #{fc_pallas.1} parent=1 // pred_fallthru
      _
    // Predicated region
    $region18: #{fc_pallas.1} parent=1 // pred_check
      _
    $region19: #{fc_pallas.1} parent=1 // pred_check_branch
      %2012 = sbr.rel (0) target = $region21
    $region20: #{fc_pallas.1} parent=1 // pred_region
      %2013 = dma.done [#allocation3], 256
    $region21: #{fc_pallas.1} parent=1 // pred_fallthru
      _
    %2014 = vsyncpa [#allocation3], 1

</llo_original>
